<compile_context>
chip_gen: v5e
topology: v5e:2x2
jax: 0.10.0
libtpu: 0.0.40
codegen_flags: <defaults>
</compile_context>

<pallas_src>
import jax
import jax.numpy as jnp
from jax.experimental import pallas as pl
from jax.experimental.pallas import tpu as pltpu


LANE = 128


def _round_up(n: int, m: int) -> int:
    return ((n + m - 1) // m) * m


def leaky02(v):
    # nn.LeakyReLU(0.2)
    return jnp.where(v >= 0, v, 0.2 * v)


# ---------------------------------------------------------------------------
# Kernel
# ---------------------------------------------------------------------------
def make_icnn_kernel(pad_units, offsets):
    """pad_units: padded output widths of A_0..A_H (last one pads width 1 -> 128).
    offsets:     column offsets of each layer inside the fused A matmul output."""
    n_w = len(pad_units) - 1  # number of W layers (== len(hidden_sizes))

    def kernel(x_ref, aw_ref, ab_ref, *rest):
        w_refs = rest[:n_w]
        out_ref = rest[n_w]

        x = x_ref[...]

        # One fused, lane-dense matmul for ALL A layers (f32 accumulation).
        ax = jnp.dot(x.astype(aw_ref.dtype), aw_ref[...],
                     preferred_element_type=jnp.float32)
        ax = ax + ab_ref[...]

        def ax_slice(k):  # static, 128-aligned slice
            return ax[:, offsets[k]:offsets[k] + pad_units[k]]

        # z = sigma(A0(x)); z = z*z
        z = leaky02(ax_slice(0))
        z = z * z

        # hidden layers: z = sigma(W_{k-1}(z) + A_k(x))
        for k in range(n_w - 1):
            wz = jnp.dot(z.astype(w_refs[k].dtype), w_refs[k][...],
                         preferred_element_type=jnp.float32)
            z = leaky02(wz + ax_slice(k + 1))

        # final affine layer, folded into the 128-padded last block (col 0 is y)
        y = jnp.dot(z.astype(w_refs[n_w - 1].dtype), w_refs[n_w - 1][...],
                    preferred_element_type=jnp.float32) + ax_slice(n_w)
        out_ref[...] = y.astype(out_ref.dtype)

    return kernel


# ---------------------------------------------------------------------------
# Parameter packing (zero-pad widths to 128 lanes, fuse A layers)
# ---------------------------------------------------------------------------
def pack_icnn_params(a_params, w_params, compute_dtype=jnp.float32):
    """a_params: list of (w[D, u_k], b[1, u_k]); w_params: list of w[u_k, u_{k+1}]."""
    units = [w.shape[1] for (w, _) in a_params]          # hidden widths + [1]
    pad_units = [_round_up(u, LANE) for u in units]
    offsets = []
    acc = 0
    for p in pad_units:
        offsets.append(acc)
        acc += p
    total = acc
    D = a_params[0][0].shape[0]

    aw = jnp.zeros((D, total), compute_dtype)
    ab = jnp.zeros((1, total), jnp.float32)              # bias stays f32
    for k, (w, b) in enumerate(a_params):
        aw = aw.at[:, offsets[k]:offsets[k] + units[k]].set(w.astype(compute_dtype))
        ab = ab.at[:, offsets[k]:offsets[k] + units[k]].set(b.astype(jnp.float32))

    w_pads = []
    for k, w in enumerate(w_params):
        wp = jnp.zeros((pad_units[k], pad_units[k + 1]), compute_dtype)
        wp = wp.at[: units[k], : units[k + 1]].set(w.astype(compute_dtype))
        w_pads.append(wp)

    return aw, ab, w_pads, tuple(pad_units), tuple(offsets)


# ---------------------------------------------------------------------------
# Wrapper
# ---------------------------------------------------------------------------
def icnn_forward_pallas(x, a_params, w_params, *, batch_tile=256, use_bf16=False,
                        vmem_limit_bytes=48 * 1024 * 1024):
    """x: [B, D] f32. a_params: list of (w[D,u], b[1,u]). w_params: list of w[u,u']."""
    B, D = x.shape
    n_w = len(w_params)
    assert len(a_params) == n_w + 1

    compute_dtype = jnp.bfloat16 if use_bf16 else jnp.float32
    aw, ab, w_pads, pad_units, offsets = pack_icnn_params(
        a_params, w_params, compute_dtype=compute_dtype)

    # --- batch-tile selection ------------------------------------------------
    bt = max(LANE, min(batch_tile, _round_up(B, LANE)))
    bt = _round_up(bt, LANE)                         # multiple of 128 (MXU M dim)
    # v7x has 2 TensorCores; prefer >=2 parallel grid steps when the batch allows.
    if _round_up(B, bt) // bt < 2 and B > LANE:
        bt = max(LANE, _round_up((B + 1) // 2, LANE))

    Bp = _round_up(B, bt)
    xp = x if Bp == B else jnp.pad(x, ((0, Bp - B), (0, 0)))
    xp = xp.astype(compute_dtype)

    kernel = make_icnn_kernel(pad_units, offsets)
    grid = (Bp // bt,)
    out_w = pad_units[-1]                            # 128 (lane-dense output store)

    def build(weights_single_buffered):
        def pspec(shape):
            if weights_single_buffered:
                # constant index_map -> double-buffering the params is pure VMEM waste
                return pl.BlockSpec(shape, lambda i: (0, 0),
                                    pipeline_mode=pl.Buffered(1))
            return pl.BlockSpec(shape, lambda i: (0, 0))

        in_specs = [pl.BlockSpec((bt, D), lambda i: (i, 0)),   # x tile
                    pspec(aw.shape), pspec(ab.shape)]
        in_specs += [pspec(w.shape) for w in w_pads]
        out_spec = pl.BlockSpec((bt, out_w), lambda i: (i, 0))

        return pl.pallas_call(
            kernel,
            out_shape=jax.ShapeDtypeStruct((Bp, out_w), jnp.float32),
            grid=grid,
            in_specs=in_specs,
            out_specs=out_spec,
            compiler_params=pltpu.CompilerParams(
                dimension_semantics=("parallel",),
                vmem_limit_bytes=vmem_limit_bytes,
            ),
        )

    args = (xp, aw, ab, *w_pads)
    try:
        out = jax.block_until_ready(build(True)(*args))
    except Exception:
        # Single-buffered params not supported on this JAX build -> default pipelining.
        out = build(False)(*args)

    return out[:B, :1]


# ---------------------------------------------------------------------------
# Pure-JAX reference (matches the PyTorch forward exactly, unpadded params)
# ---------------------------------------------------------------------------
def icnn_forward_ref(x, a_params, w_params):
    def a_layer(k, v):
        w, b = a_params[k]
        return v @ w + b

    n_w = len(w_params)
    z = leaky02(a_layer(0, x))
    z = z * z
    for k in range(n_w - 1):
        z = leaky02(z @ w_params[k] + a_layer(k + 1, x))
    return z @ w_params[n_w - 1] + a_layer(n_w, x)


def init_icnn_params(key, input_size, hidden_sizes, std=0.1):
    """kernel_init='normal' (std=0.1), zero biases; weights stored [in, out]."""
    units = list(hidden_sizes) + [1]
    keys = jax.random.split(key, 2 * len(units))
    a_params = []
    for i, odim in enumerate(units):
        w = std * jax.random.normal(keys[i], (input_size, odim), dtype=jnp.float32)
        b = jnp.zeros((1, odim), dtype=jnp.float32)
        a_params.append((w, b))
    w_params = []
    for j, (idim, odim) in enumerate(zip(units[:-1], units[1:])):
        w = std * jax.random.normal(keys[len(units) + j], (idim, odim),
                                    dtype=jnp.float32)
        w_params.append(w)
    return a_params, w_params


if __name__ == "__main__":
    key = jax.random.PRNGKey(0)
    k_x, k_p = jax.random.split(key)

    B, D = 512, 16
    hidden_sizes = [32, 32]

    x = jax.random.normal(k_x, (B, D), dtype=jnp.float32)
    a_params, w_params = init_icnn_params(k_p, D, hidden_sizes, std=0.1)

    y = icnn_forward_pallas(x, a_params, w_params, batch_tile=256)
    y = jax.block_until_ready(y)

    y_ref = icnn_forward_ref(x, a_params, w_params)
    assert y.shape == (B, 1)
    assert jnp.allclose(y, y_ref, atol=1e-4, rtol=1e-4), "mismatch vs reference"

    print("KERNEL_OK")
</pallas_src>

<mosaic_0001>
module attributes {stable_mosaic.version = 11 : i64} {
  func.func @kernel(%arg0: i32, %arg1: memref<256x16xf32, #tpu.memory_space<vmem>>, %arg2: memref<16x384xf32, #tpu.memory_space<vmem>>, %arg3: memref<1x384xf32, #tpu.memory_space<vmem>>, %arg4: memref<128x128xf32, #tpu.memory_space<vmem>>, %arg5: memref<128x128xf32, #tpu.memory_space<vmem>>, %arg6: memref<256x128xf32, #tpu.memory_space<vmem>>) attributes {dimension_semantics = [#tpu.dimension_semantics<parallel>], iteration_bounds = array<i64: 2>, scalar_prefetch = 0 : i64, scratch_operands = 0 : i64, tpu.core_type = #tpu.core_type<tc>, window_params = [{transform_indices = @transform_0, window_bounds = array<i64: 256, 16>}, {pipeline_mode = #tpu.pipeline_mode<synchronous>, transform_indices = @transform_1, window_bounds = array<i64: 16, 384>}, {pipeline_mode = #tpu.pipeline_mode<synchronous>, transform_indices = @transform_2, window_bounds = array<i64: 1, 384>}, {pipeline_mode = #tpu.pipeline_mode<synchronous>, transform_indices = @transform_3, window_bounds = array<i64: 128, 128>}, {pipeline_mode = #tpu.pipeline_mode<synchronous>, transform_indices = @transform_4, window_bounds = array<i64: 128, 128>}, {transform_indices = @transform_5, window_bounds = array<i64: 256, 128>}]} {
    %c0 = arith.constant 0 : index
    %c0_0 = arith.constant 0 : index
    %0 = vector.load %arg1[%c0, %c0_0] : memref<256x16xf32, #tpu.memory_space<vmem>>, vector<256x16xf32>
    %c0_1 = arith.constant 0 : index
    %c0_2 = arith.constant 0 : index
    %1 = vector.load %arg2[%c0_1, %c0_2] : memref<16x384xf32, #tpu.memory_space<vmem>>, vector<16x384xf32>
    %cst = arith.constant dense<0.000000e+00> : vector<256x384xf32>
    %2 = tpu.matmul %0, %1, %cst {dimension_numbers = #tpu.dot_dimension_numbers<[1], [0], [0], [1], [0, 0, 1, 1], [], []>} : vector<256x16xf32>, vector<16x384xf32>, vector<256x384xf32> -> vector<256x384xf32>
    %c0_3 = arith.constant 0 : index
    %c0_4 = arith.constant 0 : index
    %3 = vector.load %arg3[%c0_3, %c0_4] : memref<1x384xf32, #tpu.memory_space<vmem>>, vector<1x384xf32>
    %4 = vector.broadcast %3 : vector<1x384xf32> to vector<256x384xf32>
    %5 = arith.addf %2, %4 : vector<256x384xf32>
    %6 = vector.extract_strided_slice %5 {offsets = [0, 0], sizes = [256, 128], strides = [1, 1]} : vector<256x384xf32> to vector<256x128xf32>
    %cst_5 = arith.constant 0.000000e+00 : f32
    %7 = vector.broadcast %cst_5 : f32 to vector<256x128xf32>
    %8 = arith.cmpf oge, %6, %7 : vector<256x128xf32>
    %cst_6 = arith.constant 2.000000e-01 : f32
    %9 = vector.broadcast %cst_6 : f32 to vector<256x128xf32>
    %10 = arith.mulf %9, %6 : vector<256x128xf32>
    %11 = arith.select %8, %6, %10 : vector<256x128xi1>, vector<256x128xf32>
    %12 = arith.mulf %11, %11 : vector<256x128xf32>
    %c0_7 = arith.constant 0 : index
    %c0_8 = arith.constant 0 : index
    %13 = vector.load %arg4[%c0_7, %c0_8] : memref<128x128xf32, #tpu.memory_space<vmem>>, vector<128x128xf32>
    %cst_9 = arith.constant dense<0.000000e+00> : vector<256x128xf32>
    %14 = tpu.matmul %12, %13, %cst_9 {dimension_numbers = #tpu.dot_dimension_numbers<[1], [0], [0], [1], [0, 0, 1, 1], [], []>} : vector<256x128xf32>, vector<128x128xf32>, vector<256x128xf32> -> vector<256x128xf32>
    %15 = vector.extract_strided_slice %5 {offsets = [0, 128], sizes = [256, 128], strides = [1, 1]} : vector<256x384xf32> to vector<256x128xf32>
    %16 = arith.addf %14, %15 : vector<256x128xf32>
    %cst_10 = arith.constant 0.000000e+00 : f32
    %17 = vector.broadcast %cst_10 : f32 to vector<256x128xf32>
    %18 = arith.cmpf oge, %16, %17 : vector<256x128xf32>
    %cst_11 = arith.constant 2.000000e-01 : f32
    %19 = vector.broadcast %cst_11 : f32 to vector<256x128xf32>
    %20 = arith.mulf %19, %16 : vector<256x128xf32>
    %21 = arith.select %18, %16, %20 : vector<256x128xi1>, vector<256x128xf32>
    %c0_12 = arith.constant 0 : index
    %c0_13 = arith.constant 0 : index
    %22 = vector.load %arg5[%c0_12, %c0_13] : memref<128x128xf32, #tpu.memory_space<vmem>>, vector<128x128xf32>
    %cst_14 = arith.constant dense<0.000000e+00> : vector<256x128xf32>
    %23 = tpu.matmul %21, %22, %cst_14 {dimension_numbers = #tpu.dot_dimension_numbers<[1], [0], [0], [1], [0, 0, 1, 1], [], []>} : vector<256x128xf32>, vector<128x128xf32>, vector<256x128xf32> -> vector<256x128xf32>
    %24 = vector.extract_strided_slice %5 {offsets = [0, 256], sizes = [256, 128], strides = [1, 1]} : vector<256x384xf32> to vector<256x128xf32>
    %25 = arith.addf %23, %24 : vector<256x128xf32>
    %c0_15 = arith.constant 0 : index
    %c0_16 = arith.constant 0 : index
    %26 = vector.load %arg6[%c0_15, %c0_16] : memref<256x128xf32, #tpu.memory_space<vmem>>, vector<256x128xf32>
    tpu.vector_store %arg6[%c0_15, %c0_16], %25 {strides = array<i32>} : memref<256x128xf32, #tpu.memory_space<vmem>>, vector<256x128xf32>,
    return
  }
  func.func @transform_0(%arg0: i32) -> (i32, i32) {
    %c0_i32 = arith.constant 0 : i32
    %c0_i32_0 = arith.constant 0 : i32
    return %arg0, %c0_i32 : i32, i32
  }
  func.func @transform_1(%arg0: i32) -> (i32, i32) {
    %c0_i32 = arith.constant 0 : i32
    %c0_i32_0 = arith.constant 0 : i32
    %c0_i32_1 = arith.constant 0 : i32
    return %c0_i32, %c0_i32_0 : i32, i32
  }
  func.func @transform_2(%arg0: i32) -> (i32, i32) {
    %c0_i32 = arith.constant 0 : i32
    %c0_i32_0 = arith.constant 0 : i32
    %c0_i32_1 = arith.constant 0 : i32
    return %c0_i32, %c0_i32_0 : i32, i32
  }
  func.func @transform_3(%arg0: i32) -> (i32, i32) {
    %c0_i32 = arith.constant 0 : i32
    %c0_i32_0 = arith.constant 0 : i32
    %c0_i32_1 = arith.constant 0 : i32
    return %c0_i32, %c0_i32_0 : i32, i32
  }
  func.func @transform_4(%arg0: i32) -> (i32, i32) {
    %c0_i32 = arith.constant 0 : i32
    %c0_i32_0 = arith.constant 0 : i32
    %c0_i32_1 = arith.constant 0 : i32
    return %c0_i32, %c0_i32_0 : i32, i32
  }
  func.func @transform_5(%arg0: i32) -> (i32, i32) {
    %c0_i32 = arith.constant 0 : i32
    %c0_i32_0 = arith.constant 0 : i32
    return %arg0, %c0_i32 : i32, i32
  }
}

module attributes {stable_mosaic.version = 11 : i64} {
  func.func @kernel(%arg0: i32, %arg1: memref<256x16xf32, #tpu.memory_space<vmem>>, %arg2: memref<16x384xf32, #tpu.memory_space<vmem>>, %arg3: memref<1x384xf32, #tpu.memory_space<vmem>>, %arg4: memref<128x128xf32, #tpu.memory_space<vmem>>, %arg5: memref<128x128xf32, #tpu.memory_space<vmem>>, %arg6: memref<256x128xf32, #tpu.memory_space<vmem>>) attributes {dimension_semantics = [#tpu.dimension_semantics<parallel>], iteration_bounds = array<i64: 2>, scalar_prefetch = 0 : i64, scratch_operands = 0 : i64, tpu.core_type = #tpu.core_type<tc>, window_params = [{transform_indices = @transform_0, window_bounds = array<i64: 256, 16>}, {pipeline_mode = #tpu.pipeline_mode<synchronous>, transform_indices = @transform_1, window_bounds = array<i64: 16, 384>}, {pipeline_mode = #tpu.pipeline_mode<synchronous>, transform_indices = @transform_2, window_bounds = array<i64: 1, 384>}, {pipeline_mode = #tpu.pipeline_mode<synchronous>, transform_indices = @transform_3, window_bounds = array<i64: 128, 128>}, {pipeline_mode = #tpu.pipeline_mode<synchronous>, transform_indices = @transform_4, window_bounds = array<i64: 128, 128>}, {transform_indices = @transform_5, window_bounds = array<i64: 256, 128>}]} {
    %c0 = arith.constant 0 : index
    %c0_0 = arith.constant 0 : index
    %0 = vector.load %arg1[%c0, %c0_0] : memref<256x16xf32, #tpu.memory_space<vmem>>, vector<256x16xf32>
    %c0_1 = arith.constant 0 : index
    %c0_2 = arith.constant 0 : index
    %1 = vector.load %arg2[%c0_1, %c0_2] : memref<16x384xf32, #tpu.memory_space<vmem>>, vector<16x384xf32>
    %cst = arith.constant dense<0.000000e+00> : vector<256x384xf32>
    %2 = tpu.matmul %0, %1, %cst {dimension_numbers = #tpu.dot_dimension_numbers<[1], [0], [0], [1], [0, 0, 1, 1], [], []>} : vector<256x16xf32>, vector<16x384xf32>, vector<256x384xf32> -> vector<256x384xf32>
    %c0_3 = arith.constant 0 : index
    %c0_4 = arith.constant 0 : index
    %3 = vector.load %arg3[%c0_3, %c0_4] : memref<1x384xf32, #tpu.memory_space<vmem>>, vector<1x384xf32>
    %4 = vector.broadcast %3 : vector<1x384xf32> to vector<256x384xf32>
    %5 = arith.addf %2, %4 : vector<256x384xf32>
    %6 = vector.extract_strided_slice %5 {offsets = [0, 0], sizes = [256, 128], strides = [1, 1]} : vector<256x384xf32> to vector<256x128xf32>
    %cst_5 = arith.constant 0.000000e+00 : f32
    %7 = vector.broadcast %cst_5 : f32 to vector<256x128xf32>
    %8 = arith.cmpf oge, %6, %7 : vector<256x128xf32>
    %cst_6 = arith.constant 2.000000e-01 : f32
    %9 = vector.broadcast %cst_6 : f32 to vector<256x128xf32>
    %10 = arith.mulf %9, %6 : vector<256x128xf32>
    %11 = arith.select %8, %6, %10 : vector<256x128xi1>, vector<256x128xf32>
    %12 = arith.mulf %11, %11 : vector<256x128xf32>
    %c0_7 = arith.constant 0 : index
    %c0_8 = arith.constant 0 : index
    %13 = vector.load %arg4[%c0_7, %c0_8] : memref<128x128xf32, #tpu.memory_space<vmem>>, vector<128x128xf32>
    %cst_9 = arith.constant dense<0.000000e+00> : vector<256x128xf32>
    %14 = tpu.matmul %12, %13, %cst_9 {dimension_numbers = #tpu.dot_dimension_numbers<[1], [0], [0], [1], [0, 0, 1, 1], [], []>} : vector<256x128xf32>, vector<128x128xf32>, vector<256x128xf32> -> vector<256x128xf32>
    %15 = vector.extract_strided_slice %5 {offsets = [0, 128], sizes = [256, 128], strides = [1, 1]} : vector<256x384xf32> to vector<256x128xf32>
    %16 = arith.addf %14, %15 : vector<256x128xf32>
    %cst_10 = arith.constant 0.000000e+00 : f32
    %17 = vector.broadcast %cst_10 : f32 to vector<256x128xf32>
    %18 = arith.cmpf oge, %16, %17 : vector<256x128xf32>
    %cst_11 = arith.constant 2.000000e-01 : f32
    %19 = vector.broadcast %cst_11 : f32 to vector<256x128xf32>
    %20 = arith.mulf %19, %16 : vector<256x128xf32>
    %21 = arith.select %18, %16, %20 : vector<256x128xi1>, vector<256x128xf32>
    %c0_12 = arith.constant 0 : index
    %c0_13 = arith.constant 0 : index
    %22 = vector.load %arg5[%c0_12, %c0_13] : memref<128x128xf32, #tpu.memory_space<vmem>>, vector<128x128xf32>
    %cst_14 = arith.constant dense<0.000000e+00> : vector<256x128xf32>
    %23 = tpu.matmul %21, %22, %cst_14 {dimension_numbers = #tpu.dot_dimension_numbers<[1], [0], [0], [1], [0, 0, 1, 1], [], []>} : vector<256x128xf32>, vector<128x128xf32>, vector<256x128xf32> -> vector<256x128xf32>
    %24 = vector.extract_strided_slice %5 {offsets = [0, 256], sizes = [256, 128], strides = [1, 1]} : vector<256x384xf32> to vector<256x128xf32>
    %25 = arith.addf %23, %24 : vector<256x128xf32>
    %c0_15 = arith.constant 0 : index
    %c0_16 = arith.constant 0 : index
    %26 = vector.load %arg6[%c0_15, %c0_16] : memref<256x128xf32, #tpu.memory_space<vmem>>, vector<256x128xf32>
    tpu.vector_store %arg6[%c0_15, %c0_16], %25 {strides = array<i32>} : memref<256x128xf32, #tpu.memory_space<vmem>>, vector<256x128xf32>,
    return
  }
  func.func @transform_0(%arg0: i32) -> (i32, i32) {
    %c0_i32 = arith.constant 0 : i32
    %c0_i32_0 = arith.constant 0 : i32
    return %arg0, %c0_i32 : i32, i32
  }
  func.func @transform_1(%arg0: i32) -> (i32, i32) {
    %c0_i32 = arith.constant 0 : i32
    %c0_i32_0 = arith.constant 0 : i32
    %c0_i32_1 = arith.constant 0 : i32
    return %c0_i32, %c0_i32_0 : i32, i32
  }
  func.func @transform_2(%arg0: i32) -> (i32, i32) {
    %c0_i32 = arith.constant 0 : i32
    %c0_i32_0 = arith.constant 0 : i32
    %c0_i32_1 = arith.constant 0 : i32
    return %c0_i32, %c0_i32_0 : i32, i32
  }
  func.func @transform_3(%arg0: i32) -> (i32, i32) {
    %c0_i32 = arith.constant 0 : i32
    %c0_i32_0 = arith.constant 0 : i32
    %c0_i32_1 = arith.constant 0 : i32
    return %c0_i32, %c0_i32_0 : i32, i32
  }
  func.func @transform_4(%arg0: i32) -> (i32, i32) {
    %c0_i32 = arith.constant 0 : i32
    %c0_i32_0 = arith.constant 0 : i32
    %c0_i32_1 = arith.constant 0 : i32
    return %c0_i32, %c0_i32_0 : i32, i32
  }
  func.func @transform_5(%arg0: i32) -> (i32, i32) {
    %c0_i32 = arith.constant 0 : i32
    %c0_i32_0 = arith.constant 0 : i32
    return %arg0, %c0_i32 : i32, i32
  }
}

</mosaic_0001>

<llo_original>
// kernel: tpu_custom_call.1
$region0: #{tpu_custom_call.1}
  #allocation0 [shape = 'u32[]', space=smem, size = 0x4, offset = 0x4, fixed_abs, tag = 'smem constant byte address 0x4 - core index']
  #allocation1 [shape = 'u32[72,128]{1,0:T(1,128)}', space=vmem, size = 0x9000, scoped, tag = 'internal scratch']
  %s0 = inlined_call_operand.vmem [shape: f32[512,16], index: 0, kind: input, shape index: {}]
  %s1 = inlined_call_operand.vmem [shape: f32[16,384], index: 1, kind: input, shape index: {}]
  %s2 = inlined_call_operand.vmem [shape: f32[1,384], index: 2, kind: input, shape index: {}]
  %s3 = inlined_call_operand.vmem [shape: f32[128,128], index: 3, kind: input, shape index: {}]
  %s4 = inlined_call_operand.vmem [shape: f32[128,128], index: 4, kind: input, shape index: {}]
  %s5 = inlined_call_operand.hbm [shape: f32[512,128], index: 5, kind: output, shape index: {}]
  %s6 = sld [smem:[#allocation0]]
  $region53: #{tpu_custom_call.1} parent=0
    _
  %s8 = ssub.s32 1, %s6
  %s9 = scalar_select 0, %s8, %s6
  $region1: #{tpu_custom_call.1} parent=0
    #allocation2 [shape = 'u8[262144]{0}', space=vmem, size = 0x40000, scoped, tag = 'output window, operand 0']
    #allocation3 [shape = 's32[2]{0}', space=sflag, size = 0x8, scoped, tag = 'scoped memory for tpu_custom_call.1']
    %10 = vsyncpa [#allocation3], 0
    %s11 = scalar_lea.sflag [#allocation3], 1
    %12 = vsyncpa %s11, 0
    loop: start=0, step=1, limit=4
    $region2: #{tpu_custom_call.1} parent=1 // loop_pre_header
      _
    $region3: #{tpu_custom_call.1} parent=1 // loop_header
      %s14 = sphi 0, %s18
      %p15 = scmp.ge.s32.totalorder %s14, 4
      %s24 = sphi 0, %s26
      %s27 = sphi 0, %s24
      %s28 = sphi 0, %s27
      %s44 = sphi 0, %s28
      %s48 = sphi 0, %s48
      %s50 = sphi 0, %s48
      %s51 = sphi 0, %s50
      %s65 = sphi 0, %s51
      %s69 = sphi 0, %s69
      %s71 = sphi 0, %s69
      %s72 = sphi 0, %s71
      %s86 = sphi 0, %s72
      %s90 = sphi 0, %s90
      %s92 = sphi 0, %s90
      %s93 = sphi 0, %s92
      %s107 = sphi 0, %s93
      %s111 = sphi 0, %s111
      %s113 = sphi 0, %s111
      %s114 = sphi 0, %s113
      %s128 = sphi 0, %s114
      %s134 = sphi 0, %s136
      %s137 = sphi 0, %s134
      %s138 = sphi 0, %s137
      %s154 = sphi 0, %s138
    $region4: #{tpu_custom_call.1} parent=1 // loop_header_branch
      %17 = sbr.rel (%p15) target = $region8
    $region5: #{tpu_custom_call.1} parent=1 // loop_body
      %s19 = ssub.s32 %s14, 1
      %s20 = ssub.s32 %s14, 2
      %s21 = sadd.s32 %s14, 1
      %s22 = ssub.s32 %s14, %s21
      %p23 = scmp.eq.s32.totalorder %s22, 0
      %s25 = sadd.s32 %s24, 1
      %s26 = scalar_select %p23, %s24, %s25
      %p29 = pneg %p23
      %p30 = scmp.eq.s32.totalorder %s14, 1
      %p31 = por %p29, %p30
      %p32 = scmp.ne.s32.totalorder %s24, %s27
      %p33 = scmp.eq.s32.totalorder %s14, 0
      %p34 = por %p32, %p33
      %p35 = scmp.ne.s32.totalorder %s24, %s27
      %p36 = scmp.eq.s32.totalorder %s19, 1
      %p37 = por %p35, %p36
      %p38 = scmp.ne.s32.totalorder %s27, %s28
      %p39 = scmp.eq.s32.totalorder %s19, 0
      %p40 = por %p38, %p39
      %p41 = scmp.ne.s32.totalorder %s27, %s28
      %p42 = scmp.eq.s32.totalorder %s20, 1
      %p43 = por %p41, %p42
      %p45 = scmp.ne.s32.totalorder %s28, %s44
      %p46 = scmp.eq.s32.totalorder %s20, 0
      %p47 = por %p45, %p46
      %s49 = sadd.s32 %s48, 1
      %p52 = scmp.eq.s32.totalorder %s14, 1
      %p53 = scmp.ne.s32.totalorder %s48, %s50
      %p54 = scmp.eq.s32.totalorder %s14, 0
      %p55 = por %p53, %p54
      %p56 = scmp.ne.s32.totalorder %s48, %s50
      %p57 = scmp.eq.s32.totalorder %s19, 1
      %p58 = por %p56, %p57
      %p59 = scmp.ne.s32.totalorder %s50, %s51
      %p60 = scmp.eq.s32.totalorder %s19, 0
      %p61 = por %p59, %p60
      %p62 = scmp.ne.s32.totalorder %s50, %s51
      %p63 = scmp.eq.s32.totalorder %s20, 1
      %p64 = por %p62, %p63
      %p66 = scmp.ne.s32.totalorder %s51, %s65
      %p67 = scmp.eq.s32.totalorder %s20, 0
      %p68 = por %p66, %p67
      %s70 = sadd.s32 %s69, 1
      %p73 = scmp.eq.s32.totalorder %s14, 1
      %p74 = scmp.ne.s32.totalorder %s69, %s71
      %p75 = scmp.eq.s32.totalorder %s14, 0
      %p76 = por %p74, %p75
      %p77 = scmp.ne.s32.totalorder %s69, %s71
      %p78 = scmp.eq.s32.totalorder %s19, 1
      %p79 = por %p77, %p78
      %p80 = scmp.ne.s32.totalorder %s71, %s72
      %p81 = scmp.eq.s32.totalorder %s19, 0
      %p82 = por %p80, %p81
      %p83 = scmp.ne.s32.totalorder %s71, %s72
      %p84 = scmp.eq.s32.totalorder %s20, 1
      %p85 = por %p83, %p84
      %p87 = scmp.ne.s32.totalorder %s72, %s86
      %p88 = scmp.eq.s32.totalorder %s20, 0
      %p89 = por %p87, %p88
      %s91 = sadd.s32 %s90, 1
      %p94 = scmp.eq.s32.totalorder %s14, 1
      %p95 = scmp.ne.s32.totalorder %s90, %s92
      %p96 = scmp.eq.s32.totalorder %s14, 0
      %p97 = por %p95, %p96
      %p98 = scmp.ne.s32.totalorder %s90, %s92
      %p99 = scmp.eq.s32.totalorder %s19, 1
      %p100 = por %p98, %p99
      %p101 = scmp.ne.s32.totalorder %s92, %s93
      %p102 = scmp.eq.s32.totalorder %s19, 0
      %p103 = por %p101, %p102
      %p104 = scmp.ne.s32.totalorder %s92, %s93
      %p105 = scmp.eq.s32.totalorder %s20, 1
      %p106 = por %p104, %p105
      %p108 = scmp.ne.s32.totalorder %s93, %s107
      %p109 = scmp.eq.s32.totalorder %s20, 0
      %p110 = por %p108, %p109
      %s112 = sadd.s32 %s111, 1
      %p115 = scmp.eq.s32.totalorder %s14, 1
      %p116 = scmp.ne.s32.totalorder %s111, %s113
      %p117 = scmp.eq.s32.totalorder %s14, 0
      %p118 = por %p116, %p117
      %p119 = scmp.ne.s32.totalorder %s111, %s113
      %p120 = scmp.eq.s32.totalorder %s19, 1
      %p121 = por %p119, %p120
      %p122 = scmp.ne.s32.totalorder %s113, %s114
      %p123 = scmp.eq.s32.totalorder %s19, 0
      %p124 = por %p122, %p123
      %p125 = scmp.ne.s32.totalorder %s113, %s114
      %p126 = scmp.eq.s32.totalorder %s20, 1
      %p127 = por %p125, %p126
      %p129 = scmp.ne.s32.totalorder %s114, %s128
      %p130 = scmp.eq.s32.totalorder %s20, 0
      %p131 = por %p129, %p130
      %s132 = ssub.s32 %s14, %s21
      %p133 = scmp.eq.s32.totalorder %s132, 0
      %s135 = sadd.s32 %s134, 1
      %s136 = scalar_select %p133, %s134, %s135
      %p139 = pneg %p133
      %p140 = scmp.eq.s32.totalorder %s14, 1
      %p141 = por %p139, %p140
      %p142 = scmp.ne.s32.totalorder %s134, %s137
      %p143 = scmp.eq.s32.totalorder %s14, 0
      %p144 = por %p142, %p143
      %p145 = scmp.ne.s32.totalorder %s134, %s137
      %p146 = scmp.eq.s32.totalorder %s19, 1
      %p147 = por %p145, %p146
      %p148 = scmp.ne.s32.totalorder %s137, %s138
      %p149 = scmp.eq.s32.totalorder %s19, 0
      %p150 = por %p148, %p149
      %p151 = scmp.ne.s32.totalorder %s137, %s138
      %p152 = scmp.eq.s32.totalorder %s20, 1
      %p153 = por %p151, %p152
      %p155 = scmp.ne.s32.totalorder %s138, %s154
      %p156 = scmp.eq.s32.totalorder %s20, 0
      %p157 = por %p155, %p156
      %p158 = scmp.le.s32.totalorder 1, %s14
      %p159 = scmp.lt.s32.totalorder %s14, 3
      %p160 = pnand %p158, %p159
      %p161 = pneg %p160
      // Predicated region
      $region9: #{tpu_custom_call.1} parent=5 // pred_check
        _
      $region10: #{tpu_custom_call.1} parent=5 // pred_check_branch
        %163 = sbr.rel (%p160) target = $region12
      $region11: #{tpu_custom_call.1} parent=5 // pred_region
        %s164 = ssub.s32 %s14, 1
        // Predicated region
        $region13: #{tpu_custom_call.1} parent=11 // pred_check
          %p165 = pneg %p61
        $region14: #{tpu_custom_call.1} parent=11 // pred_check_branch
          %167 = sbr.rel (%p165) target = $region16
        $region15: #{tpu_custom_call.1} parent=11 // pred_region
          _
        $region16: #{tpu_custom_call.1} parent=11 // pred_fallthru
          _
        // Predicated region
        $region17: #{tpu_custom_call.1} parent=11 // pred_check
          %p168 = pneg %p82
        $region18: #{tpu_custom_call.1} parent=11 // pred_check_branch
          %170 = sbr.rel (%p168) target = $region20
        $region19: #{tpu_custom_call.1} parent=11 // pred_region
          _
        $region20: #{tpu_custom_call.1} parent=11 // pred_fallthru
          _
        // Predicated region
        $region21: #{tpu_custom_call.1} parent=11 // pred_check
          %p171 = pneg %p103
        $region22: #{tpu_custom_call.1} parent=11 // pred_check_branch
          %173 = sbr.rel (%p171) target = $region24
        $region23: #{tpu_custom_call.1} parent=11 // pred_region
          _
        $region24: #{tpu_custom_call.1} parent=11 // pred_fallthru
          _
        // Predicated region
        $region25: #{tpu_custom_call.1} parent=11 // pred_check
          %p174 = pneg %p124
        $region26: #{tpu_custom_call.1} parent=11 // pred_check_branch
          %176 = sbr.rel (%p174) target = $region28
        $region27: #{tpu_custom_call.1} parent=11 // pred_region
          _
        $region28: #{tpu_custom_call.1} parent=11 // pred_fallthru
          _
      $region12: #{tpu_custom_call.1} parent=5 // pred_fallthru
        _
      %p177 = scmp.lt.s32.totalorder %s14, 2
      // Predicated region
      $region29: #{tpu_custom_call.1} parent=5 // pred_check
        %p178 = pneg %p177
      $region30: #{tpu_custom_call.1} parent=5 // pred_check_branch
        %180 = sbr.rel (%p178) target = $region32
      $region31: #{tpu_custom_call.1} parent=5 // pred_region
        // Predicated region
        $region33: #{tpu_custom_call.1} parent=31 // pred_check
          %p181 = pneg %p34
        $region34: #{tpu_custom_call.1} parent=31 // pred_check_branch
          %183 = sbr.rel (%p181) target = $region36
        $region35: #{tpu_custom_call.1} parent=31 // pred_region
          %s184 = smul.u32 32, %s14
          %p185 = scmp.lt.s32.totalorder %s184, 63
          %s186 = scalar_select %p185, %s184, 63
          %s187 = smul.addr %s186, 8
          %s188 = scalar_lea.vmem %s0, %s187
          %s189 = smul.u32 32, %s14
        $region36: #{tpu_custom_call.1} parent=31 // pred_fallthru
          _
      $region32: #{tpu_custom_call.1} parent=5 // pred_fallthru
        _
      %p190 = scmp.le.s32.totalorder 1, %s14
      %p191 = scmp.lt.s32.totalorder %s14, 3
      %p192 = pnand %p190, %p191
      %p193 = pneg %p192
      // Predicated region
      $region37: #{tpu_custom_call.1} parent=5 // pred_check
        _
      $region38: #{tpu_custom_call.1} parent=5 // pred_check_branch
        %195 = sbr.rel (%p192) target = $region40
      $region39: #{tpu_custom_call.1} parent=5 // pred_region
        %s196 = ssub.s32 %s14, 1
        %s197 = smul.u32 32, %s19
        %p198 = scmp.lt.s32.totalorder %s197, 63
        %s199 = scalar_select %p198, %s197, 63
        %s200 = smul.addr %s199, 8
        %s201 = scalar_lea.vmem %s0, %s200
        %p202 = pneg %p40
        %p203 = pneg %p37
        %p204 = pneg %p61
        %p205 = pneg %p58
        %p206 = pneg %p82
        %p207 = pneg %p79
        %p208 = pneg %p103
        %p209 = pneg %p100
        %p210 = pneg %p124
        %p211 = pneg %p121
        %p212 = pneg %p150
        %p213 = pneg %p147
        %s214 = sand.u32 %s137, 1
        %s215 = scalar_lea.sflag [#allocation3], %s214
        %s216 = sand.u32 %s137, 1
        %s217 = smul.addr %s216, 256
        %s218 = scalar_lea.vmem [#allocation2], %s217
        %s219 = smul.u32 32, %s19
        %p220 = scmp.lt.s32.totalorder %s219, 63
        %s221 = scalar_select %p220, %s219, 63
        %s222 = smul.addr %s221, 8
        %s223 = scalar_lea.vmem %s0, %s222
        %s224 = smul.u32 32, %s19
        %s225 = smul.u32 32, %s19
        %v226 = vld [vmem:[%s223] sm:$0xff]
        %v227 = vld [vmem:[%s223 + $0x8] sm:$0xff]
        %v228 = vld [vmem:[%s223 + $0x10] sm:$0xff]
        %v229 = vld [vmem:[%s223 + $0x18] sm:$0xff]
        %v230 = vld [vmem:[%s223 + $0x20] sm:$0xff]
        %v231 = vld [vmem:[%s223 + $0x28] sm:$0xff]
        %v232 = vld [vmem:[%s223 + $0x30] sm:$0xff]
        %v233 = vld [vmem:[%s223 + $0x38] sm:$0xff]
        %v234 = vld [vmem:[%s223 + $0x40] sm:$0xff]
        %v235 = vld [vmem:[%s223 + $0x48] sm:$0xff]
        %v236 = vld [vmem:[%s223 + $0x50] sm:$0xff]
        %v237 = vld [vmem:[%s223 + $0x58] sm:$0xff]
        %v238 = vld [vmem:[%s223 + $0x60] sm:$0xff]
        %v239 = vld [vmem:[%s223 + $0x68] sm:$0xff]
        %v240 = vld [vmem:[%s223 + $0x70] sm:$0xff]
        %v241 = vld [vmem:[%s223 + $0x78] sm:$0xff]
        %v242 = vld [vmem:[%s223 + $0x80] sm:$0xff]
        %v243 = vld [vmem:[%s223 + $0x88] sm:$0xff]
        %v244 = vld [vmem:[%s223 + $0x90] sm:$0xff]
        %v245 = vld [vmem:[%s223 + $0x98] sm:$0xff]
        %v246 = vld [vmem:[%s223 + $0xa0] sm:$0xff]
        %v247 = vld [vmem:[%s223 + $0xa8] sm:$0xff]
        %v248 = vld [vmem:[%s223 + $0xb0] sm:$0xff]
        %v249 = vld [vmem:[%s223 + $0xb8] sm:$0xff]
        %v250 = vld [vmem:[%s223 + $0xc0] sm:$0xff]
        %v251 = vld [vmem:[%s223 + $0xc8] sm:$0xff]
        %v252 = vld [vmem:[%s223 + $0xd0] sm:$0xff]
        %v253 = vld [vmem:[%s223 + $0xd8] sm:$0xff]
        %v254 = vld [vmem:[%s223 + $0xe0] sm:$0xff]
        %v255 = vld [vmem:[%s223 + $0xe8] sm:$0xff]
        %v256 = vld [vmem:[%s223 + $0xf0] sm:$0xff]
        %v257 = vld [vmem:[%s223 + $0xf8] sm:$0xff]
        %v258 = vld [vmem:[%s1] sm:$0xff]
        %v259 = vld [vmem:[%s1 + $0x8] sm:$0xff]
        %v260 = vld [vmem:[%s1 + $0x10] sm:$0xff]
        %v261 = vld [vmem:[%s1 + $0x18] sm:$0xff]
        %v262 = vld [vmem:[%s1 + $0x20] sm:$0xff]
        %v263 = vld [vmem:[%s1 + $0x28] sm:$0xff]
        %v264 = vld [vmem:[%s2] sm:$0x7]
        %v266 = vperm.slane %v264, 0
        %v267 = vperm.slane %v264, 1
        %v268 = vperm.slane %v264, 2
        %vm272 = vcmask 130048
        %v274 = vsel %vm272, %v226, 0
        %v277 = vsel %vm272, %v227, 0
        %v280 = vsel %vm272, %v228, 0
        %v283 = vsel %vm272, %v229, 0
        %v286 = vsel %vm272, %v230, 0
        %v289 = vsel %vm272, %v231, 0
        %v292 = vsel %vm272, %v232, 0
        %v295 = vsel %vm272, %v233, 0
        %v298 = vsel %vm272, %v234, 0
        %v301 = vsel %vm272, %v235, 0
        %v304 = vsel %vm272, %v236, 0
        %v307 = vsel %vm272, %v237, 0
        %v310 = vsel %vm272, %v238, 0
        %v313 = vsel %vm272, %v239, 0
        %v316 = vsel %vm272, %v240, 0
        %v319 = vsel %vm272, %v241, 0
        %v322 = vsel %vm272, %v242, 0
        %v325 = vsel %vm272, %v243, 0
        %v328 = vsel %vm272, %v244, 0
        %v331 = vsel %vm272, %v245, 0
        %v334 = vsel %vm272, %v246, 0
        %v337 = vsel %vm272, %v247, 0
        %v340 = vsel %vm272, %v248, 0
        %v343 = vsel %vm272, %v249, 0
        %v346 = vsel %vm272, %v250, 0
        %v349 = vsel %vm272, %v251, 0
        %v352 = vsel %vm272, %v252, 0
        %v355 = vsel %vm272, %v253, 0
        %v358 = vsel %vm272, %v254, 0
        %v361 = vsel %vm272, %v255, 0
        %v364 = vsel %vm272, %v256, 0
        %v367 = vsel %vm272, %v257, 0
        %369 = vmatpush.msra.mxu0 0.0
        %370 = vmatpush.msra.mxu0 0.0
        %371 = vmatpush.msra.mxu0 0.0
        %372 = vmatpush.msra.mxu0 0.0
        %373 = vmatpush.msra.mxu0 0.0
        %374 = vmatpush.msra.mxu0 0.0
        %375 = vmatpush.msra.mxu0 0.0
        %376 = vmatpush.msra.mxu0 0.0
        %377 = vmatpush.msra.mxu0 0.0
        %378 = vmatpush.msra.mxu0 0.0
        %379 = vmatpush.msra.mxu0 0.0
        %380 = vmatpush.msra.mxu0 0.0
        %381 = vmatpush.msra.mxu0 0.0
        %382 = vmatpush.msra.mxu0 0.0
        %383 = vmatpush.msra.mxu0 %v261
        %384 = vmatpush.msra.mxu0 %v258
        %385 = vmatmul.f32.gmra.mxu0 %v274
        %v386 = vpop.f32.mrf.mxu0
        %v387 = vadd.f32 %v266, %v386
        %388 = vmatmul.f32.gmra.mxu0 %v277
        %v389 = vpop.f32.mrf.mxu0
        %v390 = vadd.f32 %v266, %v389
        %391 = vmatmul.f32.gmra.mxu0 %v280
        %v392 = vpop.f32.mrf.mxu0
        %v393 = vadd.f32 %v266, %v392
        %394 = vmatmul.f32.gmra.mxu0 %v283
        %v395 = vpop.f32.mrf.mxu0
        %v396 = vadd.f32 %v266, %v395
        %397 = vmatmul.f32.gmra.mxu0 %v286
        %v398 = vpop.f32.mrf.mxu0
        %v399 = vadd.f32 %v266, %v398
        %400 = vmatmul.f32.gmra.mxu0 %v289
        %v401 = vpop.f32.mrf.mxu0
        %v402 = vadd.f32 %v266, %v401
        %403 = vmatmul.f32.gmra.mxu0 %v292
        %v404 = vpop.f32.mrf.mxu0
        %v405 = vadd.f32 %v266, %v404
        %406 = vmatmul.f32.gmra.mxu0 %v295
        %v407 = vpop.f32.mrf.mxu0
        %v408 = vadd.f32 %v266, %v407
        %409 = vmatmul.f32.gmra.mxu0 %v298
        %v410 = vpop.f32.mrf.mxu0
        %v411 = vadd.f32 %v266, %v410
        %412 = vmatmul.f32.gmra.mxu0 %v301
        %v413 = vpop.f32.mrf.mxu0
        %v414 = vadd.f32 %v266, %v413
        %415 = vmatmul.f32.gmra.mxu0 %v304
        %v416 = vpop.f32.mrf.mxu0
        %v417 = vadd.f32 %v266, %v416
        %418 = vmatmul.f32.gmra.mxu0 %v307
        %v419 = vpop.f32.mrf.mxu0
        %v420 = vadd.f32 %v266, %v419
        %421 = vmatmul.f32.gmra.mxu0 %v310
        %v422 = vpop.f32.mrf.mxu0
        %v423 = vadd.f32 %v266, %v422
        %424 = vmatmul.f32.gmra.mxu0 %v313
        %v425 = vpop.f32.mrf.mxu0
        %v426 = vadd.f32 %v266, %v425
        %427 = vmatmul.f32.gmra.mxu0 %v316
        %v428 = vpop.f32.mrf.mxu0
        %v429 = vadd.f32 %v266, %v428
        %430 = vmatmul.f32.gmra.mxu0 %v319
        %v431 = vpop.f32.mrf.mxu0
        %v432 = vadd.f32 %v266, %v431
        %433 = vmatmul.f32.gmra.mxu0 %v322
        %v434 = vpop.f32.mrf.mxu0
        %v435 = vadd.f32 %v266, %v434
        %436 = vmatmul.f32.gmra.mxu0 %v325
        %v437 = vpop.f32.mrf.mxu0
        %v438 = vadd.f32 %v266, %v437
        %439 = vmatmul.f32.gmra.mxu0 %v328
        %v440 = vpop.f32.mrf.mxu0
        %v441 = vadd.f32 %v266, %v440
        %442 = vmatmul.f32.gmra.mxu0 %v331
        %v443 = vpop.f32.mrf.mxu0
        %v444 = vadd.f32 %v266, %v443
        %445 = vmatmul.f32.gmra.mxu0 %v334
        %v446 = vpop.f32.mrf.mxu0
        %v447 = vadd.f32 %v266, %v446
        %448 = vmatmul.f32.gmra.mxu0 %v337
        %v449 = vpop.f32.mrf.mxu0
        %v450 = vadd.f32 %v266, %v449
        %451 = vmatmul.f32.gmra.mxu0 %v340
        %v452 = vpop.f32.mrf.mxu0
        %v453 = vadd.f32 %v266, %v452
        %454 = vmatmul.f32.gmra.mxu0 %v343
        %v455 = vpop.f32.mrf.mxu0
        %v456 = vadd.f32 %v266, %v455
        %457 = vmatmul.f32.gmra.mxu0 %v346
        %v458 = vpop.f32.mrf.mxu0
        %v459 = vadd.f32 %v266, %v458
        %460 = vmatmul.f32.gmra.mxu0 %v349
        %v461 = vpop.f32.mrf.mxu0
        %v462 = vadd.f32 %v266, %v461
        %463 = vmatmul.f32.gmra.mxu0 %v352
        %v464 = vpop.f32.mrf.mxu0
        %v465 = vadd.f32 %v266, %v464
        %466 = vmatmul.f32.gmra.mxu0 %v355
        %v467 = vpop.f32.mrf.mxu0
        %v468 = vadd.f32 %v266, %v467
        %469 = vmatmul.f32.gmra.mxu0 %v358
        %v470 = vpop.f32.mrf.mxu0
        %v471 = vadd.f32 %v266, %v470
        %472 = vmatmul.f32.gmra.mxu0 %v361
        %v473 = vpop.f32.mrf.mxu0
        %v474 = vadd.f32 %v266, %v473
        %475 = vmatmul.f32.gmra.mxu0 %v364
        %v476 = vpop.f32.mrf.mxu0
        %v477 = vadd.f32 %v266, %v476
        %478 = vmatmul.f32.gmra.mxu0 %v367
        %v479 = vpop.f32.mrf.mxu0
        %v480 = vadd.f32 %v266, %v479
        %481 = vdwg.mxu0
        %482 = vmatpush.msra.mxu0 0.0
        %483 = vmatpush.msra.mxu0 0.0
        %484 = vmatpush.msra.mxu0 0.0
        %485 = vmatpush.msra.mxu0 0.0
        %486 = vmatpush.msra.mxu0 0.0
        %487 = vmatpush.msra.mxu0 0.0
        %488 = vmatpush.msra.mxu0 0.0
        %489 = vmatpush.msra.mxu0 0.0
        %490 = vmatpush.msra.mxu0 0.0
        %491 = vmatpush.msra.mxu0 0.0
        %492 = vmatpush.msra.mxu0 0.0
        %493 = vmatpush.msra.mxu0 0.0
        %494 = vmatpush.msra.mxu0 0.0
        %495 = vmatpush.msra.mxu0 0.0
        %496 = vmatpush.msra.mxu0 %v262
        %497 = vmatpush.msra.mxu0 %v259
        %498 = vmatmul.f32.gmra.mxu0 %v274
        %v499 = vpop.f32.mrf.mxu0
        %v500 = vadd.f32 %v267, %v499
        %501 = vmatmul.f32.gmra.mxu0 %v277
        %v502 = vpop.f32.mrf.mxu0
        %v503 = vadd.f32 %v267, %v502
        %504 = vmatmul.f32.gmra.mxu0 %v280
        %v505 = vpop.f32.mrf.mxu0
        %v506 = vadd.f32 %v267, %v505
        %507 = vmatmul.f32.gmra.mxu0 %v283
        %v508 = vpop.f32.mrf.mxu0
        %v509 = vadd.f32 %v267, %v508
        %510 = vmatmul.f32.gmra.mxu0 %v286
        %v511 = vpop.f32.mrf.mxu0
        %v512 = vadd.f32 %v267, %v511
        %513 = vmatmul.f32.gmra.mxu0 %v289
        %v514 = vpop.f32.mrf.mxu0
        %v515 = vadd.f32 %v267, %v514
        %516 = vmatmul.f32.gmra.mxu0 %v292
        %v517 = vpop.f32.mrf.mxu0
        %v518 = vadd.f32 %v267, %v517
        %519 = vmatmul.f32.gmra.mxu0 %v295
        %v520 = vpop.f32.mrf.mxu0
        %v521 = vadd.f32 %v267, %v520
        %522 = vmatmul.f32.gmra.mxu0 %v298
        %v523 = vpop.f32.mrf.mxu0
        %v524 = vadd.f32 %v267, %v523
        %525 = vmatmul.f32.gmra.mxu0 %v301
        %v526 = vpop.f32.mrf.mxu0
        %v527 = vadd.f32 %v267, %v526
        %528 = vmatmul.f32.gmra.mxu0 %v304
        %v529 = vpop.f32.mrf.mxu0
        %v530 = vadd.f32 %v267, %v529
        %531 = vmatmul.f32.gmra.mxu0 %v307
        %v532 = vpop.f32.mrf.mxu0
        %v533 = vadd.f32 %v267, %v532
        %534 = vmatmul.f32.gmra.mxu0 %v310
        %v535 = vpop.f32.mrf.mxu0
        %v536 = vadd.f32 %v267, %v535
        %537 = vmatmul.f32.gmra.mxu0 %v313
        %v538 = vpop.f32.mrf.mxu0
        %v539 = vadd.f32 %v267, %v538
        %540 = vmatmul.f32.gmra.mxu0 %v316
        %v541 = vpop.f32.mrf.mxu0
        %v542 = vadd.f32 %v267, %v541
        %543 = vmatmul.f32.gmra.mxu0 %v319
        %v544 = vpop.f32.mrf.mxu0
        %v545 = vadd.f32 %v267, %v544
        %546 = vmatmul.f32.gmra.mxu0 %v322
        %v547 = vpop.f32.mrf.mxu0
        %v548 = vadd.f32 %v267, %v547
        %549 = vmatmul.f32.gmra.mxu0 %v325
        %v550 = vpop.f32.mrf.mxu0
        %v551 = vadd.f32 %v267, %v550
        %552 = vmatmul.f32.gmra.mxu0 %v328
        %v553 = vpop.f32.mrf.mxu0
        %v554 = vadd.f32 %v267, %v553
        %555 = vmatmul.f32.gmra.mxu0 %v331
        %v556 = vpop.f32.mrf.mxu0
        %v557 = vadd.f32 %v267, %v556
        %558 = vmatmul.f32.gmra.mxu0 %v334
        %v559 = vpop.f32.mrf.mxu0
        %v560 = vadd.f32 %v267, %v559
        %561 = vmatmul.f32.gmra.mxu0 %v337
        %v562 = vpop.f32.mrf.mxu0
        %v563 = vadd.f32 %v267, %v562
        %564 = vmatmul.f32.gmra.mxu0 %v340
        %v565 = vpop.f32.mrf.mxu0
        %v566 = vadd.f32 %v267, %v565
        %567 = vmatmul.f32.gmra.mxu0 %v343
        %v568 = vpop.f32.mrf.mxu0
        %v569 = vadd.f32 %v267, %v568
        %570 = vmatmul.f32.gmra.mxu0 %v346
        %v571 = vpop.f32.mrf.mxu0
        %v572 = vadd.f32 %v267, %v571
        %573 = vmatmul.f32.gmra.mxu0 %v349
        %v574 = vpop.f32.mrf.mxu0
        %v575 = vadd.f32 %v267, %v574
        %576 = vmatmul.f32.gmra.mxu0 %v352
        %v577 = vpop.f32.mrf.mxu0
        %v578 = vadd.f32 %v267, %v577
        %579 = vmatmul.f32.gmra.mxu0 %v355
        %v580 = vpop.f32.mrf.mxu0
        %v581 = vadd.f32 %v267, %v580
        %582 = vmatmul.f32.gmra.mxu0 %v358
        %v583 = vpop.f32.mrf.mxu0
        %v584 = vadd.f32 %v267, %v583
        %585 = vmatmul.f32.gmra.mxu0 %v361
        %v586 = vpop.f32.mrf.mxu0
        %v587 = vadd.f32 %v267, %v586
        %588 = vmatmul.f32.gmra.mxu0 %v364
        %v589 = vpop.f32.mrf.mxu0
        %v590 = vadd.f32 %v267, %v589
        %591 = vmatmul.f32.gmra.mxu0 %v367
        %v592 = vpop.f32.mrf.mxu0
        %v593 = vadd.f32 %v267, %v592
        %594 = vdwg.mxu0
        %595 = vmatpush.msra.mxu0 0.0
        %596 = vmatpush.msra.mxu0 0.0
        %597 = vmatpush.msra.mxu0 0.0
        %598 = vmatpush.msra.mxu0 0.0
        %599 = vmatpush.msra.mxu0 0.0
        %600 = vmatpush.msra.mxu0 0.0
        %601 = vmatpush.msra.mxu0 0.0
        %602 = vmatpush.msra.mxu0 0.0
        %603 = vmatpush.msra.mxu0 0.0
        %604 = vmatpush.msra.mxu0 0.0
        %605 = vmatpush.msra.mxu0 0.0
        %606 = vmatpush.msra.mxu0 0.0
        %607 = vmatpush.msra.mxu0 0.0
        %608 = vmatpush.msra.mxu0 0.0
        %609 = vmatpush.msra.mxu0 %v263
        %610 = vmatpush.msra.mxu0 %v260
        %611 = vmatmul.f32.gmra.mxu0 %v274
        %v612 = vpop.f32.mrf.mxu0
        %v613 = vadd.f32 %v268, %v612
        %614 = vmatmul.f32.gmra.mxu0 %v277
        %v615 = vpop.f32.mrf.mxu0
        %v616 = vadd.f32 %v268, %v615
        %617 = vmatmul.f32.gmra.mxu0 %v280
        %v618 = vpop.f32.mrf.mxu0
        %v619 = vadd.f32 %v268, %v618
        %620 = vmatmul.f32.gmra.mxu0 %v283
        %v621 = vpop.f32.mrf.mxu0
        %v622 = vadd.f32 %v268, %v621
        %623 = vmatmul.f32.gmra.mxu0 %v286
        %v624 = vpop.f32.mrf.mxu0
        %v625 = vadd.f32 %v268, %v624
        %626 = vmatmul.f32.gmra.mxu0 %v289
        %v627 = vpop.f32.mrf.mxu0
        %v628 = vadd.f32 %v268, %v627
        %629 = vmatmul.f32.gmra.mxu0 %v292
        %v630 = vpop.f32.mrf.mxu0
        %v631 = vadd.f32 %v268, %v630
        %632 = vmatmul.f32.gmra.mxu0 %v295
        %v633 = vpop.f32.mrf.mxu0
        %v634 = vadd.f32 %v268, %v633
        %635 = vmatmul.f32.gmra.mxu0 %v298
        %v636 = vpop.f32.mrf.mxu0
        %v637 = vadd.f32 %v268, %v636
        %638 = vmatmul.f32.gmra.mxu0 %v301
        %v639 = vpop.f32.mrf.mxu0
        %v640 = vadd.f32 %v268, %v639
        %641 = vmatmul.f32.gmra.mxu0 %v304
        %v642 = vpop.f32.mrf.mxu0
        %v643 = vadd.f32 %v268, %v642
        %644 = vmatmul.f32.gmra.mxu0 %v307
        %v645 = vpop.f32.mrf.mxu0
        %v646 = vadd.f32 %v268, %v645
        %647 = vmatmul.f32.gmra.mxu0 %v310
        %v648 = vpop.f32.mrf.mxu0
        %v649 = vadd.f32 %v268, %v648
        %650 = vmatmul.f32.gmra.mxu0 %v313
        %v651 = vpop.f32.mrf.mxu0
        %v652 = vadd.f32 %v268, %v651
        %653 = vmatmul.f32.gmra.mxu0 %v316
        %v654 = vpop.f32.mrf.mxu0
        %v655 = vadd.f32 %v268, %v654
        %656 = vmatmul.f32.gmra.mxu0 %v319
        %v657 = vpop.f32.mrf.mxu0
        %v658 = vadd.f32 %v268, %v657
        %659 = vmatmul.f32.gmra.mxu0 %v322
        %v660 = vpop.f32.mrf.mxu0
        %v661 = vadd.f32 %v268, %v660
        %662 = vmatmul.f32.gmra.mxu0 %v325
        %v663 = vpop.f32.mrf.mxu0
        %v664 = vadd.f32 %v268, %v663
        %665 = vmatmul.f32.gmra.mxu0 %v328
        %v666 = vpop.f32.mrf.mxu0
        %v667 = vadd.f32 %v268, %v666
        %668 = vmatmul.f32.gmra.mxu0 %v331
        %v669 = vpop.f32.mrf.mxu0
        %v670 = vadd.f32 %v268, %v669
        %671 = vmatmul.f32.gmra.mxu0 %v334
        %v672 = vpop.f32.mrf.mxu0
        %v673 = vadd.f32 %v268, %v672
        %674 = vmatmul.f32.gmra.mxu0 %v337
        %v675 = vpop.f32.mrf.mxu0
        %v676 = vadd.f32 %v268, %v675
        %677 = vmatmul.f32.gmra.mxu0 %v340
        %v678 = vpop.f32.mrf.mxu0
        %v679 = vadd.f32 %v268, %v678
        %680 = vmatmul.f32.gmra.mxu0 %v343
        %v681 = vpop.f32.mrf.mxu0
        %v682 = vadd.f32 %v268, %v681
        %683 = vmatmul.f32.gmra.mxu0 %v346
        %v684 = vpop.f32.mrf.mxu0
        %v685 = vadd.f32 %v268, %v684
        %686 = vmatmul.f32.gmra.mxu0 %v349
        %v687 = vpop.f32.mrf.mxu0
        %v688 = vadd.f32 %v268, %v687
        %689 = vmatmul.f32.gmra.mxu0 %v352
        %v690 = vpop.f32.mrf.mxu0
        %v691 = vadd.f32 %v268, %v690
        %692 = vmatmul.f32.gmra.mxu0 %v355
        %v693 = vpop.f32.mrf.mxu0
        %v694 = vadd.f32 %v268, %v693
        %695 = vmatmul.f32.gmra.mxu0 %v358
        %v696 = vpop.f32.mrf.mxu0
        %v697 = vadd.f32 %v268, %v696
        %698 = vmatmul.f32.gmra.mxu0 %v361
        %v699 = vpop.f32.mrf.mxu0
        %v700 = vadd.f32 %v268, %v699
        %701 = vmatmul.f32.gmra.mxu0 %v364
        %v702 = vpop.f32.mrf.mxu0
        %v703 = vadd.f32 %v268, %v702
        %704 = vmatmul.f32.gmra.mxu0 %v367
        %v705 = vpop.f32.mrf.mxu0
        %v706 = vadd.f32 %v268, %v705
        %707 = vdwg.mxu0
        %vm708 = vcmp.ge.f32.partialorder %v387, 0.0
        %vm709 = vcmp.ge.f32.partialorder %v390, 0.0
        %vm710 = vcmp.ge.f32.partialorder %v393, 0.0
        %vm711 = vcmp.ge.f32.partialorder %v396, 0.0
        %vm712 = vcmp.ge.f32.partialorder %v399, 0.0
        %vm713 = vcmp.ge.f32.partialorder %v402, 0.0
        %vm714 = vcmp.ge.f32.partialorder %v405, 0.0
        %vm715 = vcmp.ge.f32.partialorder %v408, 0.0
        %vm716 = vcmp.ge.f32.partialorder %v411, 0.0
        %vm717 = vcmp.ge.f32.partialorder %v414, 0.0
        %vm718 = vcmp.ge.f32.partialorder %v417, 0.0
        %vm719 = vcmp.ge.f32.partialorder %v420, 0.0
        %vm720 = vcmp.ge.f32.partialorder %v423, 0.0
        %vm721 = vcmp.ge.f32.partialorder %v426, 0.0
        %vm722 = vcmp.ge.f32.partialorder %v429, 0.0
        %vm723 = vcmp.ge.f32.partialorder %v432, 0.0
        %vm724 = vcmp.ge.f32.partialorder %v435, 0.0
        %vm725 = vcmp.ge.f32.partialorder %v438, 0.0
        %vm726 = vcmp.ge.f32.partialorder %v441, 0.0
        %vm727 = vcmp.ge.f32.partialorder %v444, 0.0
        %vm728 = vcmp.ge.f32.partialorder %v447, 0.0
        %vm729 = vcmp.ge.f32.partialorder %v450, 0.0
        %vm730 = vcmp.ge.f32.partialorder %v453, 0.0
        %vm731 = vcmp.ge.f32.partialorder %v456, 0.0
        %vm732 = vcmp.ge.f32.partialorder %v459, 0.0
        %vm733 = vcmp.ge.f32.partialorder %v462, 0.0
        %vm734 = vcmp.ge.f32.partialorder %v465, 0.0
        %vm735 = vcmp.ge.f32.partialorder %v468, 0.0
        %vm736 = vcmp.ge.f32.partialorder %v471, 0.0
        %vm737 = vcmp.ge.f32.partialorder %v474, 0.0
        %vm738 = vcmp.ge.f32.partialorder %v477, 0.0
        %vm739 = vcmp.ge.f32.partialorder %v480, 0.0
        %v740 = vmul.f32 %v387, 0.2
        %v741 = vmul.f32 %v390, 0.2
        %v742 = vmul.f32 %v393, 0.2
        %v743 = vmul.f32 %v396, 0.2
        %v744 = vmul.f32 %v399, 0.2
        %v745 = vmul.f32 %v402, 0.2
        %v746 = vmul.f32 %v405, 0.2
        %v747 = vmul.f32 %v408, 0.2
        %v748 = vmul.f32 %v411, 0.2
        %v749 = vmul.f32 %v414, 0.2
        %v750 = vmul.f32 %v417, 0.2
        %v751 = vmul.f32 %v420, 0.2
        %v752 = vmul.f32 %v423, 0.2
        %v753 = vmul.f32 %v426, 0.2
        %v754 = vmul.f32 %v429, 0.2
        %v755 = vmul.f32 %v432, 0.2
        %v756 = vmul.f32 %v435, 0.2
        %v757 = vmul.f32 %v438, 0.2
        %v758 = vmul.f32 %v441, 0.2
        %v759 = vmul.f32 %v444, 0.2
        %v760 = vmul.f32 %v447, 0.2
        %v761 = vmul.f32 %v450, 0.2
        %v762 = vmul.f32 %v453, 0.2
        %v763 = vmul.f32 %v456, 0.2
        %v764 = vmul.f32 %v459, 0.2
        %v765 = vmul.f32 %v462, 0.2
        %v766 = vmul.f32 %v465, 0.2
        %v767 = vmul.f32 %v468, 0.2
        %v768 = vmul.f32 %v471, 0.2
        %v769 = vmul.f32 %v474, 0.2
        %v770 = vmul.f32 %v477, 0.2
        %v771 = vmul.f32 %v480, 0.2
        %v772 = vsel %vm708, %v387, %v740
        %v773 = vsel %vm709, %v390, %v741
        %v774 = vsel %vm710, %v393, %v742
        %v775 = vsel %vm711, %v396, %v743
        %v776 = vsel %vm712, %v399, %v744
        %v777 = vsel %vm713, %v402, %v745
        %v778 = vsel %vm714, %v405, %v746
        %v779 = vsel %vm715, %v408, %v747
        %v780 = vsel %vm716, %v411, %v748
        %v781 = vsel %vm717, %v414, %v749
        %v782 = vsel %vm718, %v417, %v750
        %v783 = vsel %vm719, %v420, %v751
        %v784 = vsel %vm720, %v423, %v752
        %v785 = vsel %vm721, %v426, %v753
        %v786 = vsel %vm722, %v429, %v754
        %v787 = vsel %vm723, %v432, %v755
        %v788 = vsel %vm724, %v435, %v756
        %v789 = vsel %vm725, %v438, %v757
        %v790 = vsel %vm726, %v441, %v758
        %v791 = vsel %vm727, %v444, %v759
        %v792 = vsel %vm728, %v447, %v760
        %v793 = vsel %vm729, %v450, %v761
        %v794 = vsel %vm730, %v453, %v762
        %v795 = vsel %vm731, %v456, %v763
        %v796 = vsel %vm732, %v459, %v764
        %v797 = vsel %vm733, %v462, %v765
        %v798 = vsel %vm734, %v465, %v766
        %v799 = vsel %vm735, %v468, %v767
        %v800 = vsel %vm736, %v471, %v768
        %v801 = vsel %vm737, %v474, %v769
        %v802 = vsel %vm738, %v477, %v770
        %v803 = vsel %vm739, %v480, %v771
        %v804 = vmul.f32 %v772, %v772
        %v805 = vmul.f32 %v773, %v773
        %v806 = vmul.f32 %v774, %v774
        %v807 = vmul.f32 %v775, %v775
        %v808 = vmul.f32 %v776, %v776
        %v809 = vmul.f32 %v777, %v777
        %v810 = vmul.f32 %v778, %v778
        %v811 = vmul.f32 %v779, %v779
        %v812 = vmul.f32 %v780, %v780
        %v813 = vmul.f32 %v781, %v781
        %v814 = vmul.f32 %v782, %v782
        %v815 = vmul.f32 %v783, %v783
        %v816 = vmul.f32 %v784, %v784
        %v817 = vmul.f32 %v785, %v785
        %v818 = vmul.f32 %v786, %v786
        %v819 = vmul.f32 %v787, %v787
        %v820 = vmul.f32 %v788, %v788
        %v821 = vmul.f32 %v789, %v789
        %v822 = vmul.f32 %v790, %v790
        %v823 = vmul.f32 %v791, %v791
        %v824 = vmul.f32 %v792, %v792
        %v825 = vmul.f32 %v793, %v793
        %v826 = vmul.f32 %v794, %v794
        %v827 = vmul.f32 %v795, %v795
        %v828 = vmul.f32 %v796, %v796
        %v829 = vmul.f32 %v797, %v797
        %v830 = vmul.f32 %v798, %v798
        %v831 = vmul.f32 %v799, %v799
        %v832 = vmul.f32 %v800, %v800
        %v833 = vmul.f32 %v801, %v801
        %v834 = vmul.f32 %v802, %v802
        %v835 = vmul.f32 %v803, %v803
        %v836 = vld [vmem:[%s3] sm:$0xff]
        %v837 = vld [vmem:[%s3 + $0x8] sm:$0xff]
        %v838 = vld [vmem:[%s3 + $0x10] sm:$0xff]
        %v839 = vld [vmem:[%s3 + $0x18] sm:$0xff]
        %v840 = vld [vmem:[%s3 + $0x20] sm:$0xff]
        %v841 = vld [vmem:[%s3 + $0x28] sm:$0xff]
        %v842 = vld [vmem:[%s3 + $0x30] sm:$0xff]
        %v843 = vld [vmem:[%s3 + $0x38] sm:$0xff]
        %v844 = vld [vmem:[%s3 + $0x40] sm:$0xff]
        %v845 = vld [vmem:[%s3 + $0x48] sm:$0xff]
        %v846 = vld [vmem:[%s3 + $0x50] sm:$0xff]
        %v847 = vld [vmem:[%s3 + $0x58] sm:$0xff]
        %v848 = vld [vmem:[%s3 + $0x60] sm:$0xff]
        %v849 = vld [vmem:[%s3 + $0x68] sm:$0xff]
        %v850 = vld [vmem:[%s3 + $0x70] sm:$0xff]
        %v851 = vld [vmem:[%s3 + $0x78] sm:$0xff]
        %852 = vmatpush.msra.mxu0 %v851
        %853 = vmatpush.msra.mxu0 %v850
        %854 = vmatpush.msra.mxu0 %v849
        %855 = vmatpush.msra.mxu0 %v848
        %856 = vmatpush.msra.mxu0 %v847
        %857 = vmatpush.msra.mxu0 %v846
        %858 = vmatpush.msra.mxu0 %v845
        %859 = vmatpush.msra.mxu0 %v844
        %860 = vmatpush.msra.mxu0 %v843
        %861 = vmatpush.msra.mxu0 %v842
        %862 = vmatpush.msra.mxu0 %v841
        %863 = vmatpush.msra.mxu0 %v840
        %864 = vmatpush.msra.mxu0 %v839
        %865 = vmatpush.msra.mxu0 %v838
        %866 = vmatpush.msra.mxu0 %v837
        %867 = vmatpush.msra.mxu0 %v836
        %868 = vmatmul.f32.gmra.mxu0 %v804
        %v869 = vpop.f32.mrf.mxu0
        %v870 = vadd.f32 %v500, %v869
        %871 = vmatmul.f32.gmra.mxu0 %v805
        %v872 = vpop.f32.mrf.mxu0
        %v873 = vadd.f32 %v503, %v872
        %874 = vmatmul.f32.gmra.mxu0 %v806
        %v875 = vpop.f32.mrf.mxu0
        %v876 = vadd.f32 %v506, %v875
        %877 = vmatmul.f32.gmra.mxu0 %v807
        %v878 = vpop.f32.mrf.mxu0
        %v879 = vadd.f32 %v509, %v878
        %880 = vmatmul.f32.gmra.mxu0 %v808
        %v881 = vpop.f32.mrf.mxu0
        %v882 = vadd.f32 %v512, %v881
        %883 = vmatmul.f32.gmra.mxu0 %v809
        %v884 = vpop.f32.mrf.mxu0
        %v885 = vadd.f32 %v515, %v884
        %886 = vmatmul.f32.gmra.mxu0 %v810
        %v887 = vpop.f32.mrf.mxu0
        %v888 = vadd.f32 %v518, %v887
        %889 = vmatmul.f32.gmra.mxu0 %v811
        %v890 = vpop.f32.mrf.mxu0
        %v891 = vadd.f32 %v521, %v890
        %892 = vmatmul.f32.gmra.mxu0 %v812
        %v893 = vpop.f32.mrf.mxu0
        %v894 = vadd.f32 %v524, %v893
        %895 = vmatmul.f32.gmra.mxu0 %v813
        %v896 = vpop.f32.mrf.mxu0
        %v897 = vadd.f32 %v527, %v896
        %898 = vmatmul.f32.gmra.mxu0 %v814
        %v899 = vpop.f32.mrf.mxu0
        %v900 = vadd.f32 %v530, %v899
        %901 = vmatmul.f32.gmra.mxu0 %v815
        %v902 = vpop.f32.mrf.mxu0
        %v903 = vadd.f32 %v533, %v902
        %904 = vmatmul.f32.gmra.mxu0 %v816
        %v905 = vpop.f32.mrf.mxu0
        %v906 = vadd.f32 %v536, %v905
        %907 = vmatmul.f32.gmra.mxu0 %v817
        %v908 = vpop.f32.mrf.mxu0
        %v909 = vadd.f32 %v539, %v908
        %910 = vmatmul.f32.gmra.mxu0 %v818
        %v911 = vpop.f32.mrf.mxu0
        %v912 = vadd.f32 %v542, %v911
        %913 = vmatmul.f32.gmra.mxu0 %v819
        %v914 = vpop.f32.mrf.mxu0
        %v915 = vadd.f32 %v545, %v914
        %916 = vmatmul.f32.gmra.mxu0 %v820
        %v917 = vpop.f32.mrf.mxu0
        %v918 = vadd.f32 %v548, %v917
        %919 = vmatmul.f32.gmra.mxu0 %v821
        %v920 = vpop.f32.mrf.mxu0
        %v921 = vadd.f32 %v551, %v920
        %922 = vmatmul.f32.gmra.mxu0 %v822
        %v923 = vpop.f32.mrf.mxu0
        %v924 = vadd.f32 %v554, %v923
        %925 = vmatmul.f32.gmra.mxu0 %v823
        %v926 = vpop.f32.mrf.mxu0
        %v927 = vadd.f32 %v557, %v926
        %928 = vmatmul.f32.gmra.mxu0 %v824
        %v929 = vpop.f32.mrf.mxu0
        %v930 = vadd.f32 %v560, %v929
        %931 = vmatmul.f32.gmra.mxu0 %v825
        %v932 = vpop.f32.mrf.mxu0
        %v933 = vadd.f32 %v563, %v932
        %934 = vmatmul.f32.gmra.mxu0 %v826
        %v935 = vpop.f32.mrf.mxu0
        %v936 = vadd.f32 %v566, %v935
        %937 = vmatmul.f32.gmra.mxu0 %v827
        %v938 = vpop.f32.mrf.mxu0
        %v939 = vadd.f32 %v569, %v938
        %940 = vmatmul.f32.gmra.mxu0 %v828
        %v941 = vpop.f32.mrf.mxu0
        %v942 = vadd.f32 %v572, %v941
        %943 = vmatmul.f32.gmra.mxu0 %v829
        %v944 = vpop.f32.mrf.mxu0
        %v945 = vadd.f32 %v575, %v944
        %946 = vmatmul.f32.gmra.mxu0 %v830
        %v947 = vpop.f32.mrf.mxu0
        %v948 = vadd.f32 %v578, %v947
        %949 = vmatmul.f32.gmra.mxu0 %v831
        %v950 = vpop.f32.mrf.mxu0
        %v951 = vadd.f32 %v581, %v950
        %952 = vmatmul.f32.gmra.mxu0 %v832
        %v953 = vpop.f32.mrf.mxu0
        %v954 = vadd.f32 %v584, %v953
        %955 = vmatmul.f32.gmra.mxu0 %v833
        %v956 = vpop.f32.mrf.mxu0
        %v957 = vadd.f32 %v587, %v956
        %958 = vmatmul.f32.gmra.mxu0 %v834
        %v959 = vpop.f32.mrf.mxu0
        %v960 = vadd.f32 %v590, %v959
        %961 = vmatmul.f32.gmra.mxu0 %v835
        %v962 = vpop.f32.mrf.mxu0
        %v963 = vadd.f32 %v593, %v962
        %964 = vdwg.mxu0
        %vm965 = vcmp.ge.f32.partialorder %v870, 0.0
        %vm966 = vcmp.ge.f32.partialorder %v873, 0.0
        %vm967 = vcmp.ge.f32.partialorder %v876, 0.0
        %vm968 = vcmp.ge.f32.partialorder %v879, 0.0
        %vm969 = vcmp.ge.f32.partialorder %v882, 0.0
        %vm970 = vcmp.ge.f32.partialorder %v885, 0.0
        %vm971 = vcmp.ge.f32.partialorder %v888, 0.0
        %vm972 = vcmp.ge.f32.partialorder %v891, 0.0
        %vm973 = vcmp.ge.f32.partialorder %v894, 0.0
        %vm974 = vcmp.ge.f32.partialorder %v897, 0.0
        %vm975 = vcmp.ge.f32.partialorder %v900, 0.0
        %vm976 = vcmp.ge.f32.partialorder %v903, 0.0
        %vm977 = vcmp.ge.f32.partialorder %v906, 0.0
        %vm978 = vcmp.ge.f32.partialorder %v909, 0.0
        %vm979 = vcmp.ge.f32.partialorder %v912, 0.0
        %vm980 = vcmp.ge.f32.partialorder %v915, 0.0
        %vm981 = vcmp.ge.f32.partialorder %v918, 0.0
        %vm982 = vcmp.ge.f32.partialorder %v921, 0.0
        %vm983 = vcmp.ge.f32.partialorder %v924, 0.0
        %vm984 = vcmp.ge.f32.partialorder %v927, 0.0
        %vm985 = vcmp.ge.f32.partialorder %v930, 0.0
        %vm986 = vcmp.ge.f32.partialorder %v933, 0.0
        %vm987 = vcmp.ge.f32.partialorder %v936, 0.0
        %vm988 = vcmp.ge.f32.partialorder %v939, 0.0
        %vm989 = vcmp.ge.f32.partialorder %v942, 0.0
        %vm990 = vcmp.ge.f32.partialorder %v945, 0.0
        %vm991 = vcmp.ge.f32.partialorder %v948, 0.0
        %vm992 = vcmp.ge.f32.partialorder %v951, 0.0
        %vm993 = vcmp.ge.f32.partialorder %v954, 0.0
        %vm994 = vcmp.ge.f32.partialorder %v957, 0.0
        %vm995 = vcmp.ge.f32.partialorder %v960, 0.0
        %vm996 = vcmp.ge.f32.partialorder %v963, 0.0
        %v997 = vmul.f32 %v870, 0.2
        %v998 = vmul.f32 %v873, 0.2
        %v999 = vmul.f32 %v876, 0.2
        %v1000 = vmul.f32 %v879, 0.2
        %v1001 = vmul.f32 %v882, 0.2
        %v1002 = vmul.f32 %v885, 0.2
        %v1003 = vmul.f32 %v888, 0.2
        %v1004 = vmul.f32 %v891, 0.2
        %v1005 = vmul.f32 %v894, 0.2
        %v1006 = vmul.f32 %v897, 0.2
        %v1007 = vmul.f32 %v900, 0.2
        %v1008 = vmul.f32 %v903, 0.2
        %v1009 = vmul.f32 %v906, 0.2
        %v1010 = vmul.f32 %v909, 0.2
        %v1011 = vmul.f32 %v912, 0.2
        %v1012 = vmul.f32 %v915, 0.2
        %v1013 = vmul.f32 %v918, 0.2
        %v1014 = vmul.f32 %v921, 0.2
        %v1015 = vmul.f32 %v924, 0.2
        %v1016 = vmul.f32 %v927, 0.2
        %v1017 = vmul.f32 %v930, 0.2
        %v1018 = vmul.f32 %v933, 0.2
        %v1019 = vmul.f32 %v936, 0.2
        %v1020 = vmul.f32 %v939, 0.2
        %v1021 = vmul.f32 %v942, 0.2
        %v1022 = vmul.f32 %v945, 0.2
        %v1023 = vmul.f32 %v948, 0.2
        %v1024 = vmul.f32 %v951, 0.2
        %v1025 = vmul.f32 %v954, 0.2
        %v1026 = vmul.f32 %v957, 0.2
        %v1027 = vmul.f32 %v960, 0.2
        %v1028 = vmul.f32 %v963, 0.2
        %v1029 = vsel %vm965, %v870, %v997
        %v1030 = vsel %vm966, %v873, %v998
        %v1031 = vsel %vm967, %v876, %v999
        %v1032 = vsel %vm968, %v879, %v1000
        %v1033 = vsel %vm969, %v882, %v1001
        %v1034 = vsel %vm970, %v885, %v1002
        %v1035 = vsel %vm971, %v888, %v1003
        %v1036 = vsel %vm972, %v891, %v1004
        %v1037 = vsel %vm973, %v894, %v1005
        %v1038 = vsel %vm974, %v897, %v1006
        %v1039 = vsel %vm975, %v900, %v1007
        %v1040 = vsel %vm976, %v903, %v1008
        %v1041 = vsel %vm977, %v906, %v1009
        %v1042 = vsel %vm978, %v909, %v1010
        %v1043 = vsel %vm979, %v912, %v1011
        %v1044 = vsel %vm980, %v915, %v1012
        %v1045 = vsel %vm981, %v918, %v1013
        %v1046 = vsel %vm982, %v921, %v1014
        %v1047 = vsel %vm983, %v924, %v1015
        %v1048 = vsel %vm984, %v927, %v1016
        %v1049 = vsel %vm985, %v930, %v1017
        %v1050 = vsel %vm986, %v933, %v1018
        %v1051 = vsel %vm987, %v936, %v1019
        %v1052 = vsel %vm988, %v939, %v1020
        %v1053 = vsel %vm989, %v942, %v1021
        %v1054 = vsel %vm990, %v945, %v1022
        %v1055 = vsel %vm991, %v948, %v1023
        %v1056 = vsel %vm992, %v951, %v1024
        %v1057 = vsel %vm993, %v954, %v1025
        %v1058 = vsel %vm994, %v957, %v1026
        %v1059 = vsel %vm995, %v960, %v1027
        %v1060 = vsel %vm996, %v963, %v1028
        %v1061 = vld [vmem:[%s4] sm:$0xff]
        %v1062 = vld [vmem:[%s4 + $0x8] sm:$0xff]
        %v1063 = vld [vmem:[%s4 + $0x10] sm:$0xff]
        %v1064 = vld [vmem:[%s4 + $0x18] sm:$0xff]
        %v1065 = vld [vmem:[%s4 + $0x20] sm:$0xff]
        %v1066 = vld [vmem:[%s4 + $0x28] sm:$0xff]
        %v1067 = vld [vmem:[%s4 + $0x30] sm:$0xff]
        %v1068 = vld [vmem:[%s4 + $0x38] sm:$0xff]
        %v1069 = vld [vmem:[%s4 + $0x40] sm:$0xff]
        %v1070 = vld [vmem:[%s4 + $0x48] sm:$0xff]
        %v1071 = vld [vmem:[%s4 + $0x50] sm:$0xff]
        %v1072 = vld [vmem:[%s4 + $0x58] sm:$0xff]
        %v1073 = vld [vmem:[%s4 + $0x60] sm:$0xff]
        %v1074 = vld [vmem:[%s4 + $0x68] sm:$0xff]
        %v1075 = vld [vmem:[%s4 + $0x70] sm:$0xff]
        %v1076 = vld [vmem:[%s4 + $0x78] sm:$0xff]
        %1077 = vmatpush.msra.mxu0 %v1076
        %1078 = vmatpush.msra.mxu0 %v1075
        %1079 = vmatpush.msra.mxu0 %v1074
        %1080 = vmatpush.msra.mxu0 %v1073
        %1081 = vmatpush.msra.mxu0 %v1072
        %1082 = vmatpush.msra.mxu0 %v1071
        %1083 = vmatpush.msra.mxu0 %v1070
        %1084 = vmatpush.msra.mxu0 %v1069
        %1085 = vmatpush.msra.mxu0 %v1068
        %1086 = vmatpush.msra.mxu0 %v1067
        %1087 = vmatpush.msra.mxu0 %v1066
        %1088 = vmatpush.msra.mxu0 %v1065
        %1089 = vmatpush.msra.mxu0 %v1064
        %1090 = vmatpush.msra.mxu0 %v1063
        %1091 = vmatpush.msra.mxu0 %v1062
        %1092 = vmatpush.msra.mxu0 %v1061
        %1093 = vmatmul.f32.gmra.mxu0 %v1029
        %v1094 = vpop.f32.mrf.mxu0
        %v1095 = vadd.f32 %v613, %v1094
        %1096 = vmatmul.f32.gmra.mxu0 %v1030
        %v1097 = vpop.f32.mrf.mxu0
        %v1098 = vadd.f32 %v616, %v1097
        %1099 = vmatmul.f32.gmra.mxu0 %v1031
        %v1100 = vpop.f32.mrf.mxu0
        %v1101 = vadd.f32 %v619, %v1100
        %1102 = vmatmul.f32.gmra.mxu0 %v1032
        %v1103 = vpop.f32.mrf.mxu0
        %v1104 = vadd.f32 %v622, %v1103
        %1105 = vmatmul.f32.gmra.mxu0 %v1033
        %v1106 = vpop.f32.mrf.mxu0
        %v1107 = vadd.f32 %v625, %v1106
        %1108 = vmatmul.f32.gmra.mxu0 %v1034
        %v1109 = vpop.f32.mrf.mxu0
        %v1110 = vadd.f32 %v628, %v1109
        %1111 = vmatmul.f32.gmra.mxu0 %v1035
        %v1112 = vpop.f32.mrf.mxu0
        %v1113 = vadd.f32 %v631, %v1112
        %1114 = vmatmul.f32.gmra.mxu0 %v1036
        %v1115 = vpop.f32.mrf.mxu0
        %v1116 = vadd.f32 %v634, %v1115
        %1117 = vmatmul.f32.gmra.mxu0 %v1037
        %v1118 = vpop.f32.mrf.mxu0
        %v1119 = vadd.f32 %v637, %v1118
        %1120 = vmatmul.f32.gmra.mxu0 %v1038
        %v1121 = vpop.f32.mrf.mxu0
        %v1122 = vadd.f32 %v640, %v1121
        %1123 = vmatmul.f32.gmra.mxu0 %v1039
        %v1124 = vpop.f32.mrf.mxu0
        %v1125 = vadd.f32 %v643, %v1124
        %1126 = vmatmul.f32.gmra.mxu0 %v1040
        %v1127 = vpop.f32.mrf.mxu0
        %v1128 = vadd.f32 %v646, %v1127
        %1129 = vmatmul.f32.gmra.mxu0 %v1041
        %v1130 = vpop.f32.mrf.mxu0
        %v1131 = vadd.f32 %v649, %v1130
        %1132 = vmatmul.f32.gmra.mxu0 %v1042
        %v1133 = vpop.f32.mrf.mxu0
        %v1134 = vadd.f32 %v652, %v1133
        %1135 = vmatmul.f32.gmra.mxu0 %v1043
        %v1136 = vpop.f32.mrf.mxu0
        %v1137 = vadd.f32 %v655, %v1136
        %1138 = vmatmul.f32.gmra.mxu0 %v1044
        %v1139 = vpop.f32.mrf.mxu0
        %v1140 = vadd.f32 %v658, %v1139
        %1141 = vmatmul.f32.gmra.mxu0 %v1045
        %v1142 = vpop.f32.mrf.mxu0
        %v1143 = vadd.f32 %v661, %v1142
        %1144 = vmatmul.f32.gmra.mxu0 %v1046
        %v1145 = vpop.f32.mrf.mxu0
        %v1146 = vadd.f32 %v664, %v1145
        %1147 = vmatmul.f32.gmra.mxu0 %v1047
        %v1148 = vpop.f32.mrf.mxu0
        %v1149 = vadd.f32 %v667, %v1148
        %1150 = vmatmul.f32.gmra.mxu0 %v1048
        %v1151 = vpop.f32.mrf.mxu0
        %v1152 = vadd.f32 %v670, %v1151
        %1153 = vmatmul.f32.gmra.mxu0 %v1049
        %v1154 = vpop.f32.mrf.mxu0
        %v1155 = vadd.f32 %v673, %v1154
        %1156 = vmatmul.f32.gmra.mxu0 %v1050
        %v1157 = vpop.f32.mrf.mxu0
        %v1158 = vadd.f32 %v676, %v1157
        %1159 = vmatmul.f32.gmra.mxu0 %v1051
        %v1160 = vpop.f32.mrf.mxu0
        %v1161 = vadd.f32 %v679, %v1160
        %1162 = vmatmul.f32.gmra.mxu0 %v1052
        %v1163 = vpop.f32.mrf.mxu0
        %v1164 = vadd.f32 %v682, %v1163
        %1165 = vmatmul.f32.gmra.mxu0 %v1053
        %v1166 = vpop.f32.mrf.mxu0
        %v1167 = vadd.f32 %v685, %v1166
        %1168 = vmatmul.f32.gmra.mxu0 %v1054
        %v1169 = vpop.f32.mrf.mxu0
        %v1170 = vadd.f32 %v688, %v1169
        %1171 = vmatmul.f32.gmra.mxu0 %v1055
        %v1172 = vpop.f32.mrf.mxu0
        %v1173 = vadd.f32 %v691, %v1172
        %1174 = vmatmul.f32.gmra.mxu0 %v1056
        %v1175 = vpop.f32.mrf.mxu0
        %v1176 = vadd.f32 %v694, %v1175
        %1177 = vmatmul.f32.gmra.mxu0 %v1057
        %v1178 = vpop.f32.mrf.mxu0
        %v1179 = vadd.f32 %v697, %v1178
        %1180 = vmatmul.f32.gmra.mxu0 %v1058
        %v1181 = vpop.f32.mrf.mxu0
        %v1182 = vadd.f32 %v700, %v1181
        %1183 = vmatmul.f32.gmra.mxu0 %v1059
        %v1184 = vpop.f32.mrf.mxu0
        %v1185 = vadd.f32 %v703, %v1184
        %1186 = vmatmul.f32.gmra.mxu0 %v1060
        %v1187 = vpop.f32.mrf.mxu0
        %v1188 = vadd.f32 %v706, %v1187
        %1189 = vdwg.mxu0
        %1190 = vst [vmem:[%s218] sm:$0xff] %v1095
        %1191 = vst [vmem:[%s218 + $0x8] sm:$0xff] %v1098
        %1192 = vst [vmem:[%s218 + $0x10] sm:$0xff] %v1101
        %1193 = vst [vmem:[%s218 + $0x18] sm:$0xff] %v1104
        %1194 = vst [vmem:[%s218 + $0x20] sm:$0xff] %v1107
        %1195 = vst [vmem:[%s218 + $0x28] sm:$0xff] %v1110
        %1196 = vst [vmem:[%s218 + $0x30] sm:$0xff] %v1113
        %1197 = vst [vmem:[%s218 + $0x38] sm:$0xff] %v1116
        %1198 = vst [vmem:[%s218 + $0x40] sm:$0xff] %v1119
        %1199 = vst [vmem:[%s218 + $0x48] sm:$0xff] %v1122
        %1200 = vst [vmem:[%s218 + $0x50] sm:$0xff] %v1125
        %1201 = vst [vmem:[%s218 + $0x58] sm:$0xff] %v1128
        %1202 = vst [vmem:[%s218 + $0x60] sm:$0xff] %v1131
        %1203 = vst [vmem:[%s218 + $0x68] sm:$0xff] %v1134
        %1204 = vst [vmem:[%s218 + $0x70] sm:$0xff] %v1137
        %1205 = vst [vmem:[%s218 + $0x78] sm:$0xff] %v1140
        %1206 = vst [vmem:[%s218 + $0x80] sm:$0xff] %v1143
        %1207 = vst [vmem:[%s218 + $0x88] sm:$0xff] %v1146
        %1208 = vst [vmem:[%s218 + $0x90] sm:$0xff] %v1149
        %1209 = vst [vmem:[%s218 + $0x98] sm:$0xff] %v1152
        %1210 = vst [vmem:[%s218 + $0xa0] sm:$0xff] %v1155
        %1211 = vst [vmem:[%s218 + $0xa8] sm:$0xff] %v1158
        %1212 = vst [vmem:[%s218 + $0xb0] sm:$0xff] %v1161
        %1213 = vst [vmem:[%s218 + $0xb8] sm:$0xff] %v1164
        %1214 = vst [vmem:[%s218 + $0xc0] sm:$0xff] %v1167
        %1215 = vst [vmem:[%s218 + $0xc8] sm:$0xff] %v1170
        %1216 = vst [vmem:[%s218 + $0xd0] sm:$0xff] %v1173
        %1217 = vst [vmem:[%s218 + $0xd8] sm:$0xff] %v1176
        %1218 = vst [vmem:[%s218 + $0xe0] sm:$0xff] %v1179
        %1219 = vst [vmem:[%s218 + $0xe8] sm:$0xff] %v1182
        %1220 = vst [vmem:[%s218 + $0xf0] sm:$0xff] %v1185
        %1221 = vst [vmem:[%s218 + $0xf8] sm:$0xff] %v1188
        %s1222 = sand.u32 %s137, 1
        %s1223 = scalar_lea.sflag [#allocation3], %s1222
        %s1224 = sand.u32 %s137, 1
        %s1225 = smul.addr %s1224, 256
        %s1226 = scalar_lea.vmem [#allocation2], %s1225
        // Predicated region
        $region41: #{tpu_custom_call.1} parent=39 // pred_check
          %p1227 = pneg %p147
        $region42: #{tpu_custom_call.1} parent=39 // pred_check_branch
          %1229 = sbr.rel (%p1227) target = $region44
        $region43: #{tpu_custom_call.1} parent=39 // pred_region
          %s1230 = smul.u32 32, %s19
          %1232 = vsyncadd %s1223, 0
          %s1233 = smul.addr %s1230, 8
          %s1234 = scalar_lea.hbm %s5, %s1233
          %s1235 = sshll.u32 %s1226, 4
          %s1236 = int_to_ptr.vmem [resolvable:$true] %s1235
          %s1237 = sshll.u32 %s1234, 4
          %s1238 = int_to_ptr.hbm [resolvable:$true] %s1237
          %1243 = dma.vmem_to_hbm [thread:$0]  %s1236, 4096, %s1238, %s1223, 128, 128, 8
        $region44: #{tpu_custom_call.1} parent=39 // pred_fallthru
          _
      $region40: #{tpu_custom_call.1} parent=5 // pred_fallthru
        _
      %p1244 = scmp.le.s32.totalorder 2, %s14
      // Predicated region
      $region45: #{tpu_custom_call.1} parent=5 // pred_check
        %p1245 = pneg %p1244
      $region46: #{tpu_custom_call.1} parent=5 // pred_check_branch
        %1247 = sbr.rel (%p1245) target = $region48
      $region47: #{tpu_custom_call.1} parent=5 // pred_region
        %s1248 = ssub.s32 %s14, 2
        // Predicated region
        $region49: #{tpu_custom_call.1} parent=47 // pred_check
          %p1249 = pneg %p153
        $region50: #{tpu_custom_call.1} parent=47 // pred_check_branch
          %1251 = sbr.rel (%p1249) target = $region52
        $region51: #{tpu_custom_call.1} parent=47 // pred_region
          %s1252 = sand.u32 %s138, 1
          %s1253 = scalar_lea.sflag [#allocation3], %s1252
          %s1254 = sand.u32 %s138, 1
          %s1255 = smul.addr %s1254, 256
          %s1256 = scalar_lea.vmem [#allocation2], %s1255
          %1258 = dma.done %s1253, 4096
        $region52: #{tpu_custom_call.1} parent=47 // pred_fallthru
          _
      $region48: #{tpu_custom_call.1} parent=5 // pred_fallthru
        _
    $region6: #{tpu_custom_call.1} parent=1 // loop_footer
      %s18 = sadd.s32 1, %s14
    $region7: #{tpu_custom_call.1} parent=1 // loop_footer_branch
      %13 = sbr.rel target = $region3
    $region8: #{tpu_custom_call.1} parent=1 // loop_exit
      _
    %1259 = vsyncpa [#allocation3], 1
    %s1260 = scalar_lea.sflag [#allocation3], 1
    %1261 = vsyncpa %s1260, 1

// kernel: tpu_custom_call.1
$region0: #{tpu_custom_call.1}
  #allocation0 [shape = 'u32[]', space=smem, size = 0x4, offset = 0x4, fixed_abs, tag = 'smem constant byte address 0x4 - core index']
  #allocation1 [shape = 'u32[72,128]{1,0:T(1,128)}', space=vmem, size = 0x9000, scoped, tag = 'internal scratch']
  %s0 = inlined_call_operand.vmem [shape: f32[512,16], index: 0, kind: input, shape index: {}]
  %s1 = inlined_call_operand.vmem [shape: f32[16,384], index: 1, kind: input, shape index: {}]
  %s2 = inlined_call_operand.vmem [shape: f32[1,384], index: 2, kind: input, shape index: {}]
  %s3 = inlined_call_operand.vmem [shape: f32[128,128], index: 3, kind: input, shape index: {}]
  %s4 = inlined_call_operand.vmem [shape: f32[128,128], index: 4, kind: input, shape index: {}]
  %s5 = inlined_call_operand.hbm [shape: f32[512,128], index: 5, kind: output, shape index: {}]
  %s6 = sld [smem:[#allocation0]]
  $region53: #{tpu_custom_call.1} parent=0
    _
  %s8 = ssub.s32 1, %s6
  %s9 = scalar_select 0, %s8, %s6
  $region1: #{tpu_custom_call.1} parent=0
    #allocation2 [shape = 'u8[262144]{0}', space=vmem, size = 0x40000, scoped, tag = 'output window, operand 0']
    #allocation3 [shape = 's32[2]{0}', space=sflag, size = 0x8, scoped, tag = 'scoped memory for tpu_custom_call.1']
    %10 = vsyncpa [#allocation3], 0
    %s11 = scalar_lea.sflag [#allocation3], 1
    %12 = vsyncpa %s11, 0
    loop: start=0, step=1, limit=4
    $region2: #{tpu_custom_call.1} parent=1 // loop_pre_header
      _
    $region3: #{tpu_custom_call.1} parent=1 // loop_header
      %s14 = sphi 0, %s18
      %p15 = scmp.ge.s32.totalorder %s14, 4
      %s24 = sphi 0, %s26
      %s27 = sphi 0, %s24
      %s28 = sphi 0, %s27
      %s44 = sphi 0, %s28
      %s48 = sphi 0, %s48
      %s50 = sphi 0, %s48
      %s51 = sphi 0, %s50
      %s65 = sphi 0, %s51
      %s69 = sphi 0, %s69
      %s71 = sphi 0, %s69
      %s72 = sphi 0, %s71
      %s86 = sphi 0, %s72
      %s90 = sphi 0, %s90
      %s92 = sphi 0, %s90
      %s93 = sphi 0, %s92
      %s107 = sphi 0, %s93
      %s111 = sphi 0, %s111
      %s113 = sphi 0, %s111
      %s114 = sphi 0, %s113
      %s128 = sphi 0, %s114
      %s134 = sphi 0, %s136
      %s137 = sphi 0, %s134
      %s138 = sphi 0, %s137
      %s154 = sphi 0, %s138
    $region4: #{tpu_custom_call.1} parent=1 // loop_header_branch
      %17 = sbr.rel (%p15) target = $region8
    $region5: #{tpu_custom_call.1} parent=1 // loop_body
      %s19 = ssub.s32 %s14, 1
      %s20 = ssub.s32 %s14, 2
      %s21 = sadd.s32 %s14, 1
      %s22 = ssub.s32 %s14, %s21
      %p23 = scmp.eq.s32.totalorder %s22, 0
      %s25 = sadd.s32 %s24, 1
      %s26 = scalar_select %p23, %s24, %s25
      %p29 = pneg %p23
      %p30 = scmp.eq.s32.totalorder %s14, 1
      %p31 = por %p29, %p30
      %p32 = scmp.ne.s32.totalorder %s24, %s27
      %p33 = scmp.eq.s32.totalorder %s14, 0
      %p34 = por %p32, %p33
      %p35 = scmp.ne.s32.totalorder %s24, %s27
      %p36 = scmp.eq.s32.totalorder %s19, 1
      %p37 = por %p35, %p36
      %p38 = scmp.ne.s32.totalorder %s27, %s28
      %p39 = scmp.eq.s32.totalorder %s19, 0
      %p40 = por %p38, %p39
      %p41 = scmp.ne.s32.totalorder %s27, %s28
      %p42 = scmp.eq.s32.totalorder %s20, 1
      %p43 = por %p41, %p42
      %p45 = scmp.ne.s32.totalorder %s28, %s44
      %p46 = scmp.eq.s32.totalorder %s20, 0
      %p47 = por %p45, %p46
      %s49 = sadd.s32 %s48, 1
      %p52 = scmp.eq.s32.totalorder %s14, 1
      %p53 = scmp.ne.s32.totalorder %s48, %s50
      %p54 = scmp.eq.s32.totalorder %s14, 0
      %p55 = por %p53, %p54
      %p56 = scmp.ne.s32.totalorder %s48, %s50
      %p57 = scmp.eq.s32.totalorder %s19, 1
      %p58 = por %p56, %p57
      %p59 = scmp.ne.s32.totalorder %s50, %s51
      %p60 = scmp.eq.s32.totalorder %s19, 0
      %p61 = por %p59, %p60
      %p62 = scmp.ne.s32.totalorder %s50, %s51
      %p63 = scmp.eq.s32.totalorder %s20, 1
      %p64 = por %p62, %p63
      %p66 = scmp.ne.s32.totalorder %s51, %s65
      %p67 = scmp.eq.s32.totalorder %s20, 0
      %p68 = por %p66, %p67
      %s70 = sadd.s32 %s69, 1
      %p73 = scmp.eq.s32.totalorder %s14, 1
      %p74 = scmp.ne.s32.totalorder %s69, %s71
      %p75 = scmp.eq.s32.totalorder %s14, 0
      %p76 = por %p74, %p75
      %p77 = scmp.ne.s32.totalorder %s69, %s71
      %p78 = scmp.eq.s32.totalorder %s19, 1
      %p79 = por %p77, %p78
      %p80 = scmp.ne.s32.totalorder %s71, %s72
      %p81 = scmp.eq.s32.totalorder %s19, 0
      %p82 = por %p80, %p81
      %p83 = scmp.ne.s32.totalorder %s71, %s72
      %p84 = scmp.eq.s32.totalorder %s20, 1
      %p85 = por %p83, %p84
      %p87 = scmp.ne.s32.totalorder %s72, %s86
      %p88 = scmp.eq.s32.totalorder %s20, 0
      %p89 = por %p87, %p88
      %s91 = sadd.s32 %s90, 1
      %p94 = scmp.eq.s32.totalorder %s14, 1
      %p95 = scmp.ne.s32.totalorder %s90, %s92
      %p96 = scmp.eq.s32.totalorder %s14, 0
      %p97 = por %p95, %p96
      %p98 = scmp.ne.s32.totalorder %s90, %s92
      %p99 = scmp.eq.s32.totalorder %s19, 1
      %p100 = por %p98, %p99
      %p101 = scmp.ne.s32.totalorder %s92, %s93
      %p102 = scmp.eq.s32.totalorder %s19, 0
      %p103 = por %p101, %p102
      %p104 = scmp.ne.s32.totalorder %s92, %s93
      %p105 = scmp.eq.s32.totalorder %s20, 1
      %p106 = por %p104, %p105
      %p108 = scmp.ne.s32.totalorder %s93, %s107
      %p109 = scmp.eq.s32.totalorder %s20, 0
      %p110 = por %p108, %p109
      %s112 = sadd.s32 %s111, 1
      %p115 = scmp.eq.s32.totalorder %s14, 1
      %p116 = scmp.ne.s32.totalorder %s111, %s113
      %p117 = scmp.eq.s32.totalorder %s14, 0
      %p118 = por %p116, %p117
      %p119 = scmp.ne.s32.totalorder %s111, %s113
      %p120 = scmp.eq.s32.totalorder %s19, 1
      %p121 = por %p119, %p120
      %p122 = scmp.ne.s32.totalorder %s113, %s114
      %p123 = scmp.eq.s32.totalorder %s19, 0
      %p124 = por %p122, %p123
      %p125 = scmp.ne.s32.totalorder %s113, %s114
      %p126 = scmp.eq.s32.totalorder %s20, 1
      %p127 = por %p125, %p126
      %p129 = scmp.ne.s32.totalorder %s114, %s128
      %p130 = scmp.eq.s32.totalorder %s20, 0
      %p131 = por %p129, %p130
      %s132 = ssub.s32 %s14, %s21
      %p133 = scmp.eq.s32.totalorder %s132, 0
      %s135 = sadd.s32 %s134, 1
      %s136 = scalar_select %p133, %s134, %s135
      %p139 = pneg %p133
      %p140 = scmp.eq.s32.totalorder %s14, 1
      %p141 = por %p139, %p140
      %p142 = scmp.ne.s32.totalorder %s134, %s137
      %p143 = scmp.eq.s32.totalorder %s14, 0
      %p144 = por %p142, %p143
      %p145 = scmp.ne.s32.totalorder %s134, %s137
      %p146 = scmp.eq.s32.totalorder %s19, 1
      %p147 = por %p145, %p146
      %p148 = scmp.ne.s32.totalorder %s137, %s138
      %p149 = scmp.eq.s32.totalorder %s19, 0
      %p150 = por %p148, %p149
      %p151 = scmp.ne.s32.totalorder %s137, %s138
      %p152 = scmp.eq.s32.totalorder %s20, 1
      %p153 = por %p151, %p152
      %p155 = scmp.ne.s32.totalorder %s138, %s154
      %p156 = scmp.eq.s32.totalorder %s20, 0
      %p157 = por %p155, %p156
      %p158 = scmp.le.s32.totalorder 1, %s14
      %p159 = scmp.lt.s32.totalorder %s14, 3
      %p160 = pnand %p158, %p159
      %p161 = pneg %p160
      // Predicated region
      $region9: #{tpu_custom_call.1} parent=5 // pred_check
        _
      $region10: #{tpu_custom_call.1} parent=5 // pred_check_branch
        %163 = sbr.rel (%p160) target = $region12
      $region11: #{tpu_custom_call.1} parent=5 // pred_region
        %s164 = ssub.s32 %s14, 1
        // Predicated region
        $region13: #{tpu_custom_call.1} parent=11 // pred_check
          %p165 = pneg %p61
        $region14: #{tpu_custom_call.1} parent=11 // pred_check_branch
          %167 = sbr.rel (%p165) target = $region16
        $region15: #{tpu_custom_call.1} parent=11 // pred_region
          _
        $region16: #{tpu_custom_call.1} parent=11 // pred_fallthru
          _
        // Predicated region
        $region17: #{tpu_custom_call.1} parent=11 // pred_check
          %p168 = pneg %p82
        $region18: #{tpu_custom_call.1} parent=11 // pred_check_branch
          %170 = sbr.rel (%p168) target = $region20
        $region19: #{tpu_custom_call.1} parent=11 // pred_region
          _
        $region20: #{tpu_custom_call.1} parent=11 // pred_fallthru
          _
        // Predicated region
        $region21: #{tpu_custom_call.1} parent=11 // pred_check
          %p171 = pneg %p103
        $region22: #{tpu_custom_call.1} parent=11 // pred_check_branch
          %173 = sbr.rel (%p171) target = $region24
        $region23: #{tpu_custom_call.1} parent=11 // pred_region
          _
        $region24: #{tpu_custom_call.1} parent=11 // pred_fallthru
          _
        // Predicated region
        $region25: #{tpu_custom_call.1} parent=11 // pred_check
          %p174 = pneg %p124
        $region26: #{tpu_custom_call.1} parent=11 // pred_check_branch
          %176 = sbr.rel (%p174) target = $region28
        $region27: #{tpu_custom_call.1} parent=11 // pred_region
          _
        $region28: #{tpu_custom_call.1} parent=11 // pred_fallthru
          _
      $region12: #{tpu_custom_call.1} parent=5 // pred_fallthru
        _
      %p177 = scmp.lt.s32.totalorder %s14, 2
      // Predicated region
      $region29: #{tpu_custom_call.1} parent=5 // pred_check
        %p178 = pneg %p177
      $region30: #{tpu_custom_call.1} parent=5 // pred_check_branch
        %180 = sbr.rel (%p178) target = $region32
      $region31: #{tpu_custom_call.1} parent=5 // pred_region
        // Predicated region
        $region33: #{tpu_custom_call.1} parent=31 // pred_check
          %p181 = pneg %p34
        $region34: #{tpu_custom_call.1} parent=31 // pred_check_branch
          %183 = sbr.rel (%p181) target = $region36
        $region35: #{tpu_custom_call.1} parent=31 // pred_region
          %s184 = smul.u32 32, %s14
          %p185 = scmp.lt.s32.totalorder %s184, 63
          %s186 = scalar_select %p185, %s184, 63
          %s187 = smul.addr %s186, 8
          %s188 = scalar_lea.vmem %s0, %s187
          %s189 = smul.u32 32, %s14
        $region36: #{tpu_custom_call.1} parent=31 // pred_fallthru
          _
      $region32: #{tpu_custom_call.1} parent=5 // pred_fallthru
        _
      %p190 = scmp.le.s32.totalorder 1, %s14
      %p191 = scmp.lt.s32.totalorder %s14, 3
      %p192 = pnand %p190, %p191
      %p193 = pneg %p192
      // Predicated region
      $region37: #{tpu_custom_call.1} parent=5 // pred_check
        _
      $region38: #{tpu_custom_call.1} parent=5 // pred_check_branch
        %195 = sbr.rel (%p192) target = $region40
      $region39: #{tpu_custom_call.1} parent=5 // pred_region
        %s196 = ssub.s32 %s14, 1
        %s197 = smul.u32 32, %s19
        %p198 = scmp.lt.s32.totalorder %s197, 63
        %s199 = scalar_select %p198, %s197, 63
        %s200 = smul.addr %s199, 8
        %s201 = scalar_lea.vmem %s0, %s200
        %p202 = pneg %p40
        %p203 = pneg %p37
        %p204 = pneg %p61
        %p205 = pneg %p58
        %p206 = pneg %p82
        %p207 = pneg %p79
        %p208 = pneg %p103
        %p209 = pneg %p100
        %p210 = pneg %p124
        %p211 = pneg %p121
        %p212 = pneg %p150
        %p213 = pneg %p147
        %s214 = sand.u32 %s137, 1
        %s215 = scalar_lea.sflag [#allocation3], %s214
        %s216 = sand.u32 %s137, 1
        %s217 = smul.addr %s216, 256
        %s218 = scalar_lea.vmem [#allocation2], %s217
        %s219 = smul.u32 32, %s19
        %p220 = scmp.lt.s32.totalorder %s219, 63
        %s221 = scalar_select %p220, %s219, 63
        %s222 = smul.addr %s221, 8
        %s223 = scalar_lea.vmem %s0, %s222
        %s224 = smul.u32 32, %s19
        %s225 = smul.u32 32, %s19
        %v226 = vld [vmem:[%s223] sm:$0xff]
        %v227 = vld [vmem:[%s223 + $0x8] sm:$0xff]
        %v228 = vld [vmem:[%s223 + $0x10] sm:$0xff]
        %v229 = vld [vmem:[%s223 + $0x18] sm:$0xff]
        %v230 = vld [vmem:[%s223 + $0x20] sm:$0xff]
        %v231 = vld [vmem:[%s223 + $0x28] sm:$0xff]
        %v232 = vld [vmem:[%s223 + $0x30] sm:$0xff]
        %v233 = vld [vmem:[%s223 + $0x38] sm:$0xff]
        %v234 = vld [vmem:[%s223 + $0x40] sm:$0xff]
        %v235 = vld [vmem:[%s223 + $0x48] sm:$0xff]
        %v236 = vld [vmem:[%s223 + $0x50] sm:$0xff]
        %v237 = vld [vmem:[%s223 + $0x58] sm:$0xff]
        %v238 = vld [vmem:[%s223 + $0x60] sm:$0xff]
        %v239 = vld [vmem:[%s223 + $0x68] sm:$0xff]
        %v240 = vld [vmem:[%s223 + $0x70] sm:$0xff]
        %v241 = vld [vmem:[%s223 + $0x78] sm:$0xff]
        %v242 = vld [vmem:[%s223 + $0x80] sm:$0xff]
        %v243 = vld [vmem:[%s223 + $0x88] sm:$0xff]
        %v244 = vld [vmem:[%s223 + $0x90] sm:$0xff]
        %v245 = vld [vmem:[%s223 + $0x98] sm:$0xff]
        %v246 = vld [vmem:[%s223 + $0xa0] sm:$0xff]
        %v247 = vld [vmem:[%s223 + $0xa8] sm:$0xff]
        %v248 = vld [vmem:[%s223 + $0xb0] sm:$0xff]
        %v249 = vld [vmem:[%s223 + $0xb8] sm:$0xff]
        %v250 = vld [vmem:[%s223 + $0xc0] sm:$0xff]
        %v251 = vld [vmem:[%s223 + $0xc8] sm:$0xff]
        %v252 = vld [vmem:[%s223 + $0xd0] sm:$0xff]
        %v253 = vld [vmem:[%s223 + $0xd8] sm:$0xff]
        %v254 = vld [vmem:[%s223 + $0xe0] sm:$0xff]
        %v255 = vld [vmem:[%s223 + $0xe8] sm:$0xff]
        %v256 = vld [vmem:[%s223 + $0xf0] sm:$0xff]
        %v257 = vld [vmem:[%s223 + $0xf8] sm:$0xff]
        %v258 = vld [vmem:[%s1] sm:$0xff]
        %v259 = vld [vmem:[%s1 + $0x8] sm:$0xff]
        %v260 = vld [vmem:[%s1 + $0x10] sm:$0xff]
        %v261 = vld [vmem:[%s1 + $0x18] sm:$0xff]
        %v262 = vld [vmem:[%s1 + $0x20] sm:$0xff]
        %v263 = vld [vmem:[%s1 + $0x28] sm:$0xff]
        %v264 = vld [vmem:[%s2] sm:$0x7]
        %v266 = vperm.slane %v264, 0
        %v267 = vperm.slane %v264, 1
        %v268 = vperm.slane %v264, 2
        %vm272 = vcmask 130048
        %v274 = vsel %vm272, %v226, 0
        %v277 = vsel %vm272, %v227, 0
        %v280 = vsel %vm272, %v228, 0
        %v283 = vsel %vm272, %v229, 0
        %v286 = vsel %vm272, %v230, 0
        %v289 = vsel %vm272, %v231, 0
        %v292 = vsel %vm272, %v232, 0
        %v295 = vsel %vm272, %v233, 0
        %v298 = vsel %vm272, %v234, 0
        %v301 = vsel %vm272, %v235, 0
        %v304 = vsel %vm272, %v236, 0
        %v307 = vsel %vm272, %v237, 0
        %v310 = vsel %vm272, %v238, 0
        %v313 = vsel %vm272, %v239, 0
        %v316 = vsel %vm272, %v240, 0
        %v319 = vsel %vm272, %v241, 0
        %v322 = vsel %vm272, %v242, 0
        %v325 = vsel %vm272, %v243, 0
        %v328 = vsel %vm272, %v244, 0
        %v331 = vsel %vm272, %v245, 0
        %v334 = vsel %vm272, %v246, 0
        %v337 = vsel %vm272, %v247, 0
        %v340 = vsel %vm272, %v248, 0
        %v343 = vsel %vm272, %v249, 0
        %v346 = vsel %vm272, %v250, 0
        %v349 = vsel %vm272, %v251, 0
        %v352 = vsel %vm272, %v252, 0
        %v355 = vsel %vm272, %v253, 0
        %v358 = vsel %vm272, %v254, 0
        %v361 = vsel %vm272, %v255, 0
        %v364 = vsel %vm272, %v256, 0
        %v367 = vsel %vm272, %v257, 0
        %369 = vmatpush.msra.mxu0 0.0
        %370 = vmatpush.msra.mxu0 0.0
        %371 = vmatpush.msra.mxu0 0.0
        %372 = vmatpush.msra.mxu0 0.0
        %373 = vmatpush.msra.mxu0 0.0
        %374 = vmatpush.msra.mxu0 0.0
        %375 = vmatpush.msra.mxu0 0.0
        %376 = vmatpush.msra.mxu0 0.0
        %377 = vmatpush.msra.mxu0 0.0
        %378 = vmatpush.msra.mxu0 0.0
        %379 = vmatpush.msra.mxu0 0.0
        %380 = vmatpush.msra.mxu0 0.0
        %381 = vmatpush.msra.mxu0 0.0
        %382 = vmatpush.msra.mxu0 0.0
        %383 = vmatpush.msra.mxu0 %v261
        %384 = vmatpush.msra.mxu0 %v258
        %385 = vmatmul.f32.gmra.mxu0 %v274
        %v386 = vpop.f32.mrf.mxu0
        %v387 = vadd.f32 %v266, %v386
        %388 = vmatmul.f32.gmra.mxu0 %v277
        %v389 = vpop.f32.mrf.mxu0
        %v390 = vadd.f32 %v266, %v389
        %391 = vmatmul.f32.gmra.mxu0 %v280
        %v392 = vpop.f32.mrf.mxu0
        %v393 = vadd.f32 %v266, %v392
        %394 = vmatmul.f32.gmra.mxu0 %v283
        %v395 = vpop.f32.mrf.mxu0
        %v396 = vadd.f32 %v266, %v395
        %397 = vmatmul.f32.gmra.mxu0 %v286
        %v398 = vpop.f32.mrf.mxu0
        %v399 = vadd.f32 %v266, %v398
        %400 = vmatmul.f32.gmra.mxu0 %v289
        %v401 = vpop.f32.mrf.mxu0
        %v402 = vadd.f32 %v266, %v401
        %403 = vmatmul.f32.gmra.mxu0 %v292
        %v404 = vpop.f32.mrf.mxu0
        %v405 = vadd.f32 %v266, %v404
        %406 = vmatmul.f32.gmra.mxu0 %v295
        %v407 = vpop.f32.mrf.mxu0
        %v408 = vadd.f32 %v266, %v407
        %409 = vmatmul.f32.gmra.mxu0 %v298
        %v410 = vpop.f32.mrf.mxu0
        %v411 = vadd.f32 %v266, %v410
        %412 = vmatmul.f32.gmra.mxu0 %v301
        %v413 = vpop.f32.mrf.mxu0
        %v414 = vadd.f32 %v266, %v413
        %415 = vmatmul.f32.gmra.mxu0 %v304
        %v416 = vpop.f32.mrf.mxu0
        %v417 = vadd.f32 %v266, %v416
        %418 = vmatmul.f32.gmra.mxu0 %v307
        %v419 = vpop.f32.mrf.mxu0
        %v420 = vadd.f32 %v266, %v419
        %421 = vmatmul.f32.gmra.mxu0 %v310
        %v422 = vpop.f32.mrf.mxu0
        %v423 = vadd.f32 %v266, %v422
        %424 = vmatmul.f32.gmra.mxu0 %v313
        %v425 = vpop.f32.mrf.mxu0
        %v426 = vadd.f32 %v266, %v425
        %427 = vmatmul.f32.gmra.mxu0 %v316
        %v428 = vpop.f32.mrf.mxu0
        %v429 = vadd.f32 %v266, %v428
        %430 = vmatmul.f32.gmra.mxu0 %v319
        %v431 = vpop.f32.mrf.mxu0
        %v432 = vadd.f32 %v266, %v431
        %433 = vmatmul.f32.gmra.mxu0 %v322
        %v434 = vpop.f32.mrf.mxu0
        %v435 = vadd.f32 %v266, %v434
        %436 = vmatmul.f32.gmra.mxu0 %v325
        %v437 = vpop.f32.mrf.mxu0
        %v438 = vadd.f32 %v266, %v437
        %439 = vmatmul.f32.gmra.mxu0 %v328
        %v440 = vpop.f32.mrf.mxu0
        %v441 = vadd.f32 %v266, %v440
        %442 = vmatmul.f32.gmra.mxu0 %v331
        %v443 = vpop.f32.mrf.mxu0
        %v444 = vadd.f32 %v266, %v443
        %445 = vmatmul.f32.gmra.mxu0 %v334
        %v446 = vpop.f32.mrf.mxu0
        %v447 = vadd.f32 %v266, %v446
        %448 = vmatmul.f32.gmra.mxu0 %v337
        %v449 = vpop.f32.mrf.mxu0
        %v450 = vadd.f32 %v266, %v449
        %451 = vmatmul.f32.gmra.mxu0 %v340
        %v452 = vpop.f32.mrf.mxu0
        %v453 = vadd.f32 %v266, %v452
        %454 = vmatmul.f32.gmra.mxu0 %v343
        %v455 = vpop.f32.mrf.mxu0
        %v456 = vadd.f32 %v266, %v455
        %457 = vmatmul.f32.gmra.mxu0 %v346
        %v458 = vpop.f32.mrf.mxu0
        %v459 = vadd.f32 %v266, %v458
        %460 = vmatmul.f32.gmra.mxu0 %v349
        %v461 = vpop.f32.mrf.mxu0
        %v462 = vadd.f32 %v266, %v461
        %463 = vmatmul.f32.gmra.mxu0 %v352
        %v464 = vpop.f32.mrf.mxu0
        %v465 = vadd.f32 %v266, %v464
        %466 = vmatmul.f32.gmra.mxu0 %v355
        %v467 = vpop.f32.mrf.mxu0
        %v468 = vadd.f32 %v266, %v467
        %469 = vmatmul.f32.gmra.mxu0 %v358
        %v470 = vpop.f32.mrf.mxu0
        %v471 = vadd.f32 %v266, %v470
        %472 = vmatmul.f32.gmra.mxu0 %v361
        %v473 = vpop.f32.mrf.mxu0
        %v474 = vadd.f32 %v266, %v473
        %475 = vmatmul.f32.gmra.mxu0 %v364
        %v476 = vpop.f32.mrf.mxu0
        %v477 = vadd.f32 %v266, %v476
        %478 = vmatmul.f32.gmra.mxu0 %v367
        %v479 = vpop.f32.mrf.mxu0
        %v480 = vadd.f32 %v266, %v479
        %481 = vdwg.mxu0
        %482 = vmatpush.msra.mxu0 0.0
        %483 = vmatpush.msra.mxu0 0.0
        %484 = vmatpush.msra.mxu0 0.0
        %485 = vmatpush.msra.mxu0 0.0
        %486 = vmatpush.msra.mxu0 0.0
        %487 = vmatpush.msra.mxu0 0.0
        %488 = vmatpush.msra.mxu0 0.0
        %489 = vmatpush.msra.mxu0 0.0
        %490 = vmatpush.msra.mxu0 0.0
        %491 = vmatpush.msra.mxu0 0.0
        %492 = vmatpush.msra.mxu0 0.0
        %493 = vmatpush.msra.mxu0 0.0
        %494 = vmatpush.msra.mxu0 0.0
        %495 = vmatpush.msra.mxu0 0.0
        %496 = vmatpush.msra.mxu0 %v262
        %497 = vmatpush.msra.mxu0 %v259
        %498 = vmatmul.f32.gmra.mxu0 %v274
        %v499 = vpop.f32.mrf.mxu0
        %v500 = vadd.f32 %v267, %v499
        %501 = vmatmul.f32.gmra.mxu0 %v277
        %v502 = vpop.f32.mrf.mxu0
        %v503 = vadd.f32 %v267, %v502
        %504 = vmatmul.f32.gmra.mxu0 %v280
        %v505 = vpop.f32.mrf.mxu0
        %v506 = vadd.f32 %v267, %v505
        %507 = vmatmul.f32.gmra.mxu0 %v283
        %v508 = vpop.f32.mrf.mxu0
        %v509 = vadd.f32 %v267, %v508
        %510 = vmatmul.f32.gmra.mxu0 %v286
        %v511 = vpop.f32.mrf.mxu0
        %v512 = vadd.f32 %v267, %v511
        %513 = vmatmul.f32.gmra.mxu0 %v289
        %v514 = vpop.f32.mrf.mxu0
        %v515 = vadd.f32 %v267, %v514
        %516 = vmatmul.f32.gmra.mxu0 %v292
        %v517 = vpop.f32.mrf.mxu0
        %v518 = vadd.f32 %v267, %v517
        %519 = vmatmul.f32.gmra.mxu0 %v295
        %v520 = vpop.f32.mrf.mxu0
        %v521 = vadd.f32 %v267, %v520
        %522 = vmatmul.f32.gmra.mxu0 %v298
        %v523 = vpop.f32.mrf.mxu0
        %v524 = vadd.f32 %v267, %v523
        %525 = vmatmul.f32.gmra.mxu0 %v301
        %v526 = vpop.f32.mrf.mxu0
        %v527 = vadd.f32 %v267, %v526
        %528 = vmatmul.f32.gmra.mxu0 %v304
        %v529 = vpop.f32.mrf.mxu0
        %v530 = vadd.f32 %v267, %v529
        %531 = vmatmul.f32.gmra.mxu0 %v307
        %v532 = vpop.f32.mrf.mxu0
        %v533 = vadd.f32 %v267, %v532
        %534 = vmatmul.f32.gmra.mxu0 %v310
        %v535 = vpop.f32.mrf.mxu0
        %v536 = vadd.f32 %v267, %v535
        %537 = vmatmul.f32.gmra.mxu0 %v313
        %v538 = vpop.f32.mrf.mxu0
        %v539 = vadd.f32 %v267, %v538
        %540 = vmatmul.f32.gmra.mxu0 %v316
        %v541 = vpop.f32.mrf.mxu0
        %v542 = vadd.f32 %v267, %v541
        %543 = vmatmul.f32.gmra.mxu0 %v319
        %v544 = vpop.f32.mrf.mxu0
        %v545 = vadd.f32 %v267, %v544
        %546 = vmatmul.f32.gmra.mxu0 %v322
        %v547 = vpop.f32.mrf.mxu0
        %v548 = vadd.f32 %v267, %v547
        %549 = vmatmul.f32.gmra.mxu0 %v325
        %v550 = vpop.f32.mrf.mxu0
        %v551 = vadd.f32 %v267, %v550
        %552 = vmatmul.f32.gmra.mxu0 %v328
        %v553 = vpop.f32.mrf.mxu0
        %v554 = vadd.f32 %v267, %v553
        %555 = vmatmul.f32.gmra.mxu0 %v331
        %v556 = vpop.f32.mrf.mxu0
        %v557 = vadd.f32 %v267, %v556
        %558 = vmatmul.f32.gmra.mxu0 %v334
        %v559 = vpop.f32.mrf.mxu0
        %v560 = vadd.f32 %v267, %v559
        %561 = vmatmul.f32.gmra.mxu0 %v337
        %v562 = vpop.f32.mrf.mxu0
        %v563 = vadd.f32 %v267, %v562
        %564 = vmatmul.f32.gmra.mxu0 %v340
        %v565 = vpop.f32.mrf.mxu0
        %v566 = vadd.f32 %v267, %v565
        %567 = vmatmul.f32.gmra.mxu0 %v343
        %v568 = vpop.f32.mrf.mxu0
        %v569 = vadd.f32 %v267, %v568
        %570 = vmatmul.f32.gmra.mxu0 %v346
        %v571 = vpop.f32.mrf.mxu0
        %v572 = vadd.f32 %v267, %v571
        %573 = vmatmul.f32.gmra.mxu0 %v349
        %v574 = vpop.f32.mrf.mxu0
        %v575 = vadd.f32 %v267, %v574
        %576 = vmatmul.f32.gmra.mxu0 %v352
        %v577 = vpop.f32.mrf.mxu0
        %v578 = vadd.f32 %v267, %v577
        %579 = vmatmul.f32.gmra.mxu0 %v355
        %v580 = vpop.f32.mrf.mxu0
        %v581 = vadd.f32 %v267, %v580
        %582 = vmatmul.f32.gmra.mxu0 %v358
        %v583 = vpop.f32.mrf.mxu0
        %v584 = vadd.f32 %v267, %v583
        %585 = vmatmul.f32.gmra.mxu0 %v361
        %v586 = vpop.f32.mrf.mxu0
        %v587 = vadd.f32 %v267, %v586
        %588 = vmatmul.f32.gmra.mxu0 %v364
        %v589 = vpop.f32.mrf.mxu0
        %v590 = vadd.f32 %v267, %v589
        %591 = vmatmul.f32.gmra.mxu0 %v367
        %v592 = vpop.f32.mrf.mxu0
        %v593 = vadd.f32 %v267, %v592
        %594 = vdwg.mxu0
        %595 = vmatpush.msra.mxu0 0.0
        %596 = vmatpush.msra.mxu0 0.0
        %597 = vmatpush.msra.mxu0 0.0
        %598 = vmatpush.msra.mxu0 0.0
        %599 = vmatpush.msra.mxu0 0.0
        %600 = vmatpush.msra.mxu0 0.0
        %601 = vmatpush.msra.mxu0 0.0
        %602 = vmatpush.msra.mxu0 0.0
        %603 = vmatpush.msra.mxu0 0.0
        %604 = vmatpush.msra.mxu0 0.0
        %605 = vmatpush.msra.mxu0 0.0
        %606 = vmatpush.msra.mxu0 0.0
        %607 = vmatpush.msra.mxu0 0.0
        %608 = vmatpush.msra.mxu0 0.0
        %609 = vmatpush.msra.mxu0 %v263
        %610 = vmatpush.msra.mxu0 %v260
        %611 = vmatmul.f32.gmra.mxu0 %v274
        %v612 = vpop.f32.mrf.mxu0
        %v613 = vadd.f32 %v268, %v612
        %614 = vmatmul.f32.gmra.mxu0 %v277
        %v615 = vpop.f32.mrf.mxu0
        %v616 = vadd.f32 %v268, %v615
        %617 = vmatmul.f32.gmra.mxu0 %v280
        %v618 = vpop.f32.mrf.mxu0
        %v619 = vadd.f32 %v268, %v618
        %620 = vmatmul.f32.gmra.mxu0 %v283
        %v621 = vpop.f32.mrf.mxu0
        %v622 = vadd.f32 %v268, %v621
        %623 = vmatmul.f32.gmra.mxu0 %v286
        %v624 = vpop.f32.mrf.mxu0
        %v625 = vadd.f32 %v268, %v624
        %626 = vmatmul.f32.gmra.mxu0 %v289
        %v627 = vpop.f32.mrf.mxu0
        %v628 = vadd.f32 %v268, %v627
        %629 = vmatmul.f32.gmra.mxu0 %v292
        %v630 = vpop.f32.mrf.mxu0
        %v631 = vadd.f32 %v268, %v630
        %632 = vmatmul.f32.gmra.mxu0 %v295
        %v633 = vpop.f32.mrf.mxu0
        %v634 = vadd.f32 %v268, %v633
        %635 = vmatmul.f32.gmra.mxu0 %v298
        %v636 = vpop.f32.mrf.mxu0
        %v637 = vadd.f32 %v268, %v636
        %638 = vmatmul.f32.gmra.mxu0 %v301
        %v639 = vpop.f32.mrf.mxu0
        %v640 = vadd.f32 %v268, %v639
        %641 = vmatmul.f32.gmra.mxu0 %v304
        %v642 = vpop.f32.mrf.mxu0
        %v643 = vadd.f32 %v268, %v642
        %644 = vmatmul.f32.gmra.mxu0 %v307
        %v645 = vpop.f32.mrf.mxu0
        %v646 = vadd.f32 %v268, %v645
        %647 = vmatmul.f32.gmra.mxu0 %v310
        %v648 = vpop.f32.mrf.mxu0
        %v649 = vadd.f32 %v268, %v648
        %650 = vmatmul.f32.gmra.mxu0 %v313
        %v651 = vpop.f32.mrf.mxu0
        %v652 = vadd.f32 %v268, %v651
        %653 = vmatmul.f32.gmra.mxu0 %v316
        %v654 = vpop.f32.mrf.mxu0
        %v655 = vadd.f32 %v268, %v654
        %656 = vmatmul.f32.gmra.mxu0 %v319
        %v657 = vpop.f32.mrf.mxu0
        %v658 = vadd.f32 %v268, %v657
        %659 = vmatmul.f32.gmra.mxu0 %v322
        %v660 = vpop.f32.mrf.mxu0
        %v661 = vadd.f32 %v268, %v660
        %662 = vmatmul.f32.gmra.mxu0 %v325
        %v663 = vpop.f32.mrf.mxu0
        %v664 = vadd.f32 %v268, %v663
        %665 = vmatmul.f32.gmra.mxu0 %v328
        %v666 = vpop.f32.mrf.mxu0
        %v667 = vadd.f32 %v268, %v666
        %668 = vmatmul.f32.gmra.mxu0 %v331
        %v669 = vpop.f32.mrf.mxu0
        %v670 = vadd.f32 %v268, %v669
        %671 = vmatmul.f32.gmra.mxu0 %v334
        %v672 = vpop.f32.mrf.mxu0
        %v673 = vadd.f32 %v268, %v672
        %674 = vmatmul.f32.gmra.mxu0 %v337
        %v675 = vpop.f32.mrf.mxu0
        %v676 = vadd.f32 %v268, %v675
        %677 = vmatmul.f32.gmra.mxu0 %v340
        %v678 = vpop.f32.mrf.mxu0
        %v679 = vadd.f32 %v268, %v678
        %680 = vmatmul.f32.gmra.mxu0 %v343
        %v681 = vpop.f32.mrf.mxu0
        %v682 = vadd.f32 %v268, %v681
        %683 = vmatmul.f32.gmra.mxu0 %v346
        %v684 = vpop.f32.mrf.mxu0
        %v685 = vadd.f32 %v268, %v684
        %686 = vmatmul.f32.gmra.mxu0 %v349
        %v687 = vpop.f32.mrf.mxu0
        %v688 = vadd.f32 %v268, %v687
        %689 = vmatmul.f32.gmra.mxu0 %v352
        %v690 = vpop.f32.mrf.mxu0
        %v691 = vadd.f32 %v268, %v690
        %692 = vmatmul.f32.gmra.mxu0 %v355
        %v693 = vpop.f32.mrf.mxu0
        %v694 = vadd.f32 %v268, %v693
        %695 = vmatmul.f32.gmra.mxu0 %v358
        %v696 = vpop.f32.mrf.mxu0
        %v697 = vadd.f32 %v268, %v696
        %698 = vmatmul.f32.gmra.mxu0 %v361
        %v699 = vpop.f32.mrf.mxu0
        %v700 = vadd.f32 %v268, %v699
        %701 = vmatmul.f32.gmra.mxu0 %v364
        %v702 = vpop.f32.mrf.mxu0
        %v703 = vadd.f32 %v268, %v702
        %704 = vmatmul.f32.gmra.mxu0 %v367
        %v705 = vpop.f32.mrf.mxu0
        %v706 = vadd.f32 %v268, %v705
        %707 = vdwg.mxu0
        %vm708 = vcmp.ge.f32.partialorder %v387, 0.0
        %vm709 = vcmp.ge.f32.partialorder %v390, 0.0
        %vm710 = vcmp.ge.f32.partialorder %v393, 0.0
        %vm711 = vcmp.ge.f32.partialorder %v396, 0.0
        %vm712 = vcmp.ge.f32.partialorder %v399, 0.0
        %vm713 = vcmp.ge.f32.partialorder %v402, 0.0
        %vm714 = vcmp.ge.f32.partialorder %v405, 0.0
        %vm715 = vcmp.ge.f32.partialorder %v408, 0.0
        %vm716 = vcmp.ge.f32.partialorder %v411, 0.0
        %vm717 = vcmp.ge.f32.partialorder %v414, 0.0
        %vm718 = vcmp.ge.f32.partialorder %v417, 0.0
        %vm719 = vcmp.ge.f32.partialorder %v420, 0.0
        %vm720 = vcmp.ge.f32.partialorder %v423, 0.0
        %vm721 = vcmp.ge.f32.partialorder %v426, 0.0
        %vm722 = vcmp.ge.f32.partialorder %v429, 0.0
        %vm723 = vcmp.ge.f32.partialorder %v432, 0.0
        %vm724 = vcmp.ge.f32.partialorder %v435, 0.0
        %vm725 = vcmp.ge.f32.partialorder %v438, 0.0
        %vm726 = vcmp.ge.f32.partialorder %v441, 0.0
        %vm727 = vcmp.ge.f32.partialorder %v444, 0.0
        %vm728 = vcmp.ge.f32.partialorder %v447, 0.0
        %vm729 = vcmp.ge.f32.partialorder %v450, 0.0
        %vm730 = vcmp.ge.f32.partialorder %v453, 0.0
        %vm731 = vcmp.ge.f32.partialorder %v456, 0.0
        %vm732 = vcmp.ge.f32.partialorder %v459, 0.0
        %vm733 = vcmp.ge.f32.partialorder %v462, 0.0
        %vm734 = vcmp.ge.f32.partialorder %v465, 0.0
        %vm735 = vcmp.ge.f32.partialorder %v468, 0.0
        %vm736 = vcmp.ge.f32.partialorder %v471, 0.0
        %vm737 = vcmp.ge.f32.partialorder %v474, 0.0
        %vm738 = vcmp.ge.f32.partialorder %v477, 0.0
        %vm739 = vcmp.ge.f32.partialorder %v480, 0.0
        %v740 = vmul.f32 %v387, 0.2
        %v741 = vmul.f32 %v390, 0.2
        %v742 = vmul.f32 %v393, 0.2
        %v743 = vmul.f32 %v396, 0.2
        %v744 = vmul.f32 %v399, 0.2
        %v745 = vmul.f32 %v402, 0.2
        %v746 = vmul.f32 %v405, 0.2
        %v747 = vmul.f32 %v408, 0.2
        %v748 = vmul.f32 %v411, 0.2
        %v749 = vmul.f32 %v414, 0.2
        %v750 = vmul.f32 %v417, 0.2
        %v751 = vmul.f32 %v420, 0.2
        %v752 = vmul.f32 %v423, 0.2
        %v753 = vmul.f32 %v426, 0.2
        %v754 = vmul.f32 %v429, 0.2
        %v755 = vmul.f32 %v432, 0.2
        %v756 = vmul.f32 %v435, 0.2
        %v757 = vmul.f32 %v438, 0.2
        %v758 = vmul.f32 %v441, 0.2
        %v759 = vmul.f32 %v444, 0.2
        %v760 = vmul.f32 %v447, 0.2
        %v761 = vmul.f32 %v450, 0.2
        %v762 = vmul.f32 %v453, 0.2
        %v763 = vmul.f32 %v456, 0.2
        %v764 = vmul.f32 %v459, 0.2
        %v765 = vmul.f32 %v462, 0.2
        %v766 = vmul.f32 %v465, 0.2
        %v767 = vmul.f32 %v468, 0.2
        %v768 = vmul.f32 %v471, 0.2
        %v769 = vmul.f32 %v474, 0.2
        %v770 = vmul.f32 %v477, 0.2
        %v771 = vmul.f32 %v480, 0.2
        %v772 = vsel %vm708, %v387, %v740
        %v773 = vsel %vm709, %v390, %v741
        %v774 = vsel %vm710, %v393, %v742
        %v775 = vsel %vm711, %v396, %v743
        %v776 = vsel %vm712, %v399, %v744
        %v777 = vsel %vm713, %v402, %v745
        %v778 = vsel %vm714, %v405, %v746
        %v779 = vsel %vm715, %v408, %v747
        %v780 = vsel %vm716, %v411, %v748
        %v781 = vsel %vm717, %v414, %v749
        %v782 = vsel %vm718, %v417, %v750
        %v783 = vsel %vm719, %v420, %v751
        %v784 = vsel %vm720, %v423, %v752
        %v785 = vsel %vm721, %v426, %v753
        %v786 = vsel %vm722, %v429, %v754
        %v787 = vsel %vm723, %v432, %v755
        %v788 = vsel %vm724, %v435, %v756
        %v789 = vsel %vm725, %v438, %v757
        %v790 = vsel %vm726, %v441, %v758
        %v791 = vsel %vm727, %v444, %v759
        %v792 = vsel %vm728, %v447, %v760
        %v793 = vsel %vm729, %v450, %v761
        %v794 = vsel %vm730, %v453, %v762
        %v795 = vsel %vm731, %v456, %v763
        %v796 = vsel %vm732, %v459, %v764
        %v797 = vsel %vm733, %v462, %v765
        %v798 = vsel %vm734, %v465, %v766
        %v799 = vsel %vm735, %v468, %v767
        %v800 = vsel %vm736, %v471, %v768
        %v801 = vsel %vm737, %v474, %v769
        %v802 = vsel %vm738, %v477, %v770
        %v803 = vsel %vm739, %v480, %v771
        %v804 = vmul.f32 %v772, %v772
        %v805 = vmul.f32 %v773, %v773
        %v806 = vmul.f32 %v774, %v774
        %v807 = vmul.f32 %v775, %v775
        %v808 = vmul.f32 %v776, %v776
        %v809 = vmul.f32 %v777, %v777
        %v810 = vmul.f32 %v778, %v778
        %v811 = vmul.f32 %v779, %v779
        %v812 = vmul.f32 %v780, %v780
        %v813 = vmul.f32 %v781, %v781
        %v814 = vmul.f32 %v782, %v782
        %v815 = vmul.f32 %v783, %v783
        %v816 = vmul.f32 %v784, %v784
        %v817 = vmul.f32 %v785, %v785
        %v818 = vmul.f32 %v786, %v786
        %v819 = vmul.f32 %v787, %v787
        %v820 = vmul.f32 %v788, %v788
        %v821 = vmul.f32 %v789, %v789
        %v822 = vmul.f32 %v790, %v790
        %v823 = vmul.f32 %v791, %v791
        %v824 = vmul.f32 %v792, %v792
        %v825 = vmul.f32 %v793, %v793
        %v826 = vmul.f32 %v794, %v794
        %v827 = vmul.f32 %v795, %v795
        %v828 = vmul.f32 %v796, %v796
        %v829 = vmul.f32 %v797, %v797
        %v830 = vmul.f32 %v798, %v798
        %v831 = vmul.f32 %v799, %v799
        %v832 = vmul.f32 %v800, %v800
        %v833 = vmul.f32 %v801, %v801
        %v834 = vmul.f32 %v802, %v802
        %v835 = vmul.f32 %v803, %v803
        %v836 = vld [vmem:[%s3] sm:$0xff]
        %v837 = vld [vmem:[%s3 + $0x8] sm:$0xff]
        %v838 = vld [vmem:[%s3 + $0x10] sm:$0xff]
        %v839 = vld [vmem:[%s3 + $0x18] sm:$0xff]
        %v840 = vld [vmem:[%s3 + $0x20] sm:$0xff]
        %v841 = vld [vmem:[%s3 + $0x28] sm:$0xff]
        %v842 = vld [vmem:[%s3 + $0x30] sm:$0xff]
        %v843 = vld [vmem:[%s3 + $0x38] sm:$0xff]
        %v844 = vld [vmem:[%s3 + $0x40] sm:$0xff]
        %v845 = vld [vmem:[%s3 + $0x48] sm:$0xff]
        %v846 = vld [vmem:[%s3 + $0x50] sm:$0xff]
        %v847 = vld [vmem:[%s3 + $0x58] sm:$0xff]
        %v848 = vld [vmem:[%s3 + $0x60] sm:$0xff]
        %v849 = vld [vmem:[%s3 + $0x68] sm:$0xff]
        %v850 = vld [vmem:[%s3 + $0x70] sm:$0xff]
        %v851 = vld [vmem:[%s3 + $0x78] sm:$0xff]
        %852 = vmatpush.msra.mxu0 %v851
        %853 = vmatpush.msra.mxu0 %v850
        %854 = vmatpush.msra.mxu0 %v849
        %855 = vmatpush.msra.mxu0 %v848
        %856 = vmatpush.msra.mxu0 %v847
        %857 = vmatpush.msra.mxu0 %v846
        %858 = vmatpush.msra.mxu0 %v845
        %859 = vmatpush.msra.mxu0 %v844
        %860 = vmatpush.msra.mxu0 %v843
        %861 = vmatpush.msra.mxu0 %v842
        %862 = vmatpush.msra.mxu0 %v841
        %863 = vmatpush.msra.mxu0 %v840
        %864 = vmatpush.msra.mxu0 %v839
        %865 = vmatpush.msra.mxu0 %v838
        %866 = vmatpush.msra.mxu0 %v837
        %867 = vmatpush.msra.mxu0 %v836
        %868 = vmatmul.f32.gmra.mxu0 %v804
        %v869 = vpop.f32.mrf.mxu0
        %v870 = vadd.f32 %v500, %v869
        %871 = vmatmul.f32.gmra.mxu0 %v805
        %v872 = vpop.f32.mrf.mxu0
        %v873 = vadd.f32 %v503, %v872
        %874 = vmatmul.f32.gmra.mxu0 %v806
        %v875 = vpop.f32.mrf.mxu0
        %v876 = vadd.f32 %v506, %v875
        %877 = vmatmul.f32.gmra.mxu0 %v807
        %v878 = vpop.f32.mrf.mxu0
        %v879 = vadd.f32 %v509, %v878
        %880 = vmatmul.f32.gmra.mxu0 %v808
        %v881 = vpop.f32.mrf.mxu0
        %v882 = vadd.f32 %v512, %v881
        %883 = vmatmul.f32.gmra.mxu0 %v809
        %v884 = vpop.f32.mrf.mxu0
        %v885 = vadd.f32 %v515, %v884
        %886 = vmatmul.f32.gmra.mxu0 %v810
        %v887 = vpop.f32.mrf.mxu0
        %v888 = vadd.f32 %v518, %v887
        %889 = vmatmul.f32.gmra.mxu0 %v811
        %v890 = vpop.f32.mrf.mxu0
        %v891 = vadd.f32 %v521, %v890
        %892 = vmatmul.f32.gmra.mxu0 %v812
        %v893 = vpop.f32.mrf.mxu0
        %v894 = vadd.f32 %v524, %v893
        %895 = vmatmul.f32.gmra.mxu0 %v813
        %v896 = vpop.f32.mrf.mxu0
        %v897 = vadd.f32 %v527, %v896
        %898 = vmatmul.f32.gmra.mxu0 %v814
        %v899 = vpop.f32.mrf.mxu0
        %v900 = vadd.f32 %v530, %v899
        %901 = vmatmul.f32.gmra.mxu0 %v815
        %v902 = vpop.f32.mrf.mxu0
        %v903 = vadd.f32 %v533, %v902
        %904 = vmatmul.f32.gmra.mxu0 %v816
        %v905 = vpop.f32.mrf.mxu0
        %v906 = vadd.f32 %v536, %v905
        %907 = vmatmul.f32.gmra.mxu0 %v817
        %v908 = vpop.f32.mrf.mxu0
        %v909 = vadd.f32 %v539, %v908
        %910 = vmatmul.f32.gmra.mxu0 %v818
        %v911 = vpop.f32.mrf.mxu0
        %v912 = vadd.f32 %v542, %v911
        %913 = vmatmul.f32.gmra.mxu0 %v819
        %v914 = vpop.f32.mrf.mxu0
        %v915 = vadd.f32 %v545, %v914
        %916 = vmatmul.f32.gmra.mxu0 %v820
        %v917 = vpop.f32.mrf.mxu0
        %v918 = vadd.f32 %v548, %v917
        %919 = vmatmul.f32.gmra.mxu0 %v821
        %v920 = vpop.f32.mrf.mxu0
        %v921 = vadd.f32 %v551, %v920
        %922 = vmatmul.f32.gmra.mxu0 %v822
        %v923 = vpop.f32.mrf.mxu0
        %v924 = vadd.f32 %v554, %v923
        %925 = vmatmul.f32.gmra.mxu0 %v823
        %v926 = vpop.f32.mrf.mxu0
        %v927 = vadd.f32 %v557, %v926
        %928 = vmatmul.f32.gmra.mxu0 %v824
        %v929 = vpop.f32.mrf.mxu0
        %v930 = vadd.f32 %v560, %v929
        %931 = vmatmul.f32.gmra.mxu0 %v825
        %v932 = vpop.f32.mrf.mxu0
        %v933 = vadd.f32 %v563, %v932
        %934 = vmatmul.f32.gmra.mxu0 %v826
        %v935 = vpop.f32.mrf.mxu0
        %v936 = vadd.f32 %v566, %v935
        %937 = vmatmul.f32.gmra.mxu0 %v827
        %v938 = vpop.f32.mrf.mxu0
        %v939 = vadd.f32 %v569, %v938
        %940 = vmatmul.f32.gmra.mxu0 %v828
        %v941 = vpop.f32.mrf.mxu0
        %v942 = vadd.f32 %v572, %v941
        %943 = vmatmul.f32.gmra.mxu0 %v829
        %v944 = vpop.f32.mrf.mxu0
        %v945 = vadd.f32 %v575, %v944
        %946 = vmatmul.f32.gmra.mxu0 %v830
        %v947 = vpop.f32.mrf.mxu0
        %v948 = vadd.f32 %v578, %v947
        %949 = vmatmul.f32.gmra.mxu0 %v831
        %v950 = vpop.f32.mrf.mxu0
        %v951 = vadd.f32 %v581, %v950
        %952 = vmatmul.f32.gmra.mxu0 %v832
        %v953 = vpop.f32.mrf.mxu0
        %v954 = vadd.f32 %v584, %v953
        %955 = vmatmul.f32.gmra.mxu0 %v833
        %v956 = vpop.f32.mrf.mxu0
        %v957 = vadd.f32 %v587, %v956
        %958 = vmatmul.f32.gmra.mxu0 %v834
        %v959 = vpop.f32.mrf.mxu0
        %v960 = vadd.f32 %v590, %v959
        %961 = vmatmul.f32.gmra.mxu0 %v835
        %v962 = vpop.f32.mrf.mxu0
        %v963 = vadd.f32 %v593, %v962
        %964 = vdwg.mxu0
        %vm965 = vcmp.ge.f32.partialorder %v870, 0.0
        %vm966 = vcmp.ge.f32.partialorder %v873, 0.0
        %vm967 = vcmp.ge.f32.partialorder %v876, 0.0
        %vm968 = vcmp.ge.f32.partialorder %v879, 0.0
        %vm969 = vcmp.ge.f32.partialorder %v882, 0.0
        %vm970 = vcmp.ge.f32.partialorder %v885, 0.0
        %vm971 = vcmp.ge.f32.partialorder %v888, 0.0
        %vm972 = vcmp.ge.f32.partialorder %v891, 0.0
        %vm973 = vcmp.ge.f32.partialorder %v894, 0.0
        %vm974 = vcmp.ge.f32.partialorder %v897, 0.0
        %vm975 = vcmp.ge.f32.partialorder %v900, 0.0
        %vm976 = vcmp.ge.f32.partialorder %v903, 0.0
        %vm977 = vcmp.ge.f32.partialorder %v906, 0.0
        %vm978 = vcmp.ge.f32.partialorder %v909, 0.0
        %vm979 = vcmp.ge.f32.partialorder %v912, 0.0
        %vm980 = vcmp.ge.f32.partialorder %v915, 0.0
        %vm981 = vcmp.ge.f32.partialorder %v918, 0.0
        %vm982 = vcmp.ge.f32.partialorder %v921, 0.0
        %vm983 = vcmp.ge.f32.partialorder %v924, 0.0
        %vm984 = vcmp.ge.f32.partialorder %v927, 0.0
        %vm985 = vcmp.ge.f32.partialorder %v930, 0.0
        %vm986 = vcmp.ge.f32.partialorder %v933, 0.0
        %vm987 = vcmp.ge.f32.partialorder %v936, 0.0
        %vm988 = vcmp.ge.f32.partialorder %v939, 0.0
        %vm989 = vcmp.ge.f32.partialorder %v942, 0.0
        %vm990 = vcmp.ge.f32.partialorder %v945, 0.0
        %vm991 = vcmp.ge.f32.partialorder %v948, 0.0
        %vm992 = vcmp.ge.f32.partialorder %v951, 0.0
        %vm993 = vcmp.ge.f32.partialorder %v954, 0.0
        %vm994 = vcmp.ge.f32.partialorder %v957, 0.0
        %vm995 = vcmp.ge.f32.partialorder %v960, 0.0
        %vm996 = vcmp.ge.f32.partialorder %v963, 0.0
        %v997 = vmul.f32 %v870, 0.2
        %v998 = vmul.f32 %v873, 0.2
        %v999 = vmul.f32 %v876, 0.2
        %v1000 = vmul.f32 %v879, 0.2
        %v1001 = vmul.f32 %v882, 0.2
        %v1002 = vmul.f32 %v885, 0.2
        %v1003 = vmul.f32 %v888, 0.2
        %v1004 = vmul.f32 %v891, 0.2
        %v1005 = vmul.f32 %v894, 0.2
        %v1006 = vmul.f32 %v897, 0.2
        %v1007 = vmul.f32 %v900, 0.2
        %v1008 = vmul.f32 %v903, 0.2
        %v1009 = vmul.f32 %v906, 0.2
        %v1010 = vmul.f32 %v909, 0.2
        %v1011 = vmul.f32 %v912, 0.2
        %v1012 = vmul.f32 %v915, 0.2
        %v1013 = vmul.f32 %v918, 0.2
        %v1014 = vmul.f32 %v921, 0.2
        %v1015 = vmul.f32 %v924, 0.2
        %v1016 = vmul.f32 %v927, 0.2
        %v1017 = vmul.f32 %v930, 0.2
        %v1018 = vmul.f32 %v933, 0.2
        %v1019 = vmul.f32 %v936, 0.2
        %v1020 = vmul.f32 %v939, 0.2
        %v1021 = vmul.f32 %v942, 0.2
        %v1022 = vmul.f32 %v945, 0.2
        %v1023 = vmul.f32 %v948, 0.2
        %v1024 = vmul.f32 %v951, 0.2
        %v1025 = vmul.f32 %v954, 0.2
        %v1026 = vmul.f32 %v957, 0.2
        %v1027 = vmul.f32 %v960, 0.2
        %v1028 = vmul.f32 %v963, 0.2
        %v1029 = vsel %vm965, %v870, %v997
        %v1030 = vsel %vm966, %v873, %v998
        %v1031 = vsel %vm967, %v876, %v999
        %v1032 = vsel %vm968, %v879, %v1000
        %v1033 = vsel %vm969, %v882, %v1001
        %v1034 = vsel %vm970, %v885, %v1002
        %v1035 = vsel %vm971, %v888, %v1003
        %v1036 = vsel %vm972, %v891, %v1004
        %v1037 = vsel %vm973, %v894, %v1005
        %v1038 = vsel %vm974, %v897, %v1006
        %v1039 = vsel %vm975, %v900, %v1007
        %v1040 = vsel %vm976, %v903, %v1008
        %v1041 = vsel %vm977, %v906, %v1009
        %v1042 = vsel %vm978, %v909, %v1010
        %v1043 = vsel %vm979, %v912, %v1011
        %v1044 = vsel %vm980, %v915, %v1012
        %v1045 = vsel %vm981, %v918, %v1013
        %v1046 = vsel %vm982, %v921, %v1014
        %v1047 = vsel %vm983, %v924, %v1015
        %v1048 = vsel %vm984, %v927, %v1016
        %v1049 = vsel %vm985, %v930, %v1017
        %v1050 = vsel %vm986, %v933, %v1018
        %v1051 = vsel %vm987, %v936, %v1019
        %v1052 = vsel %vm988, %v939, %v1020
        %v1053 = vsel %vm989, %v942, %v1021
        %v1054 = vsel %vm990, %v945, %v1022
        %v1055 = vsel %vm991, %v948, %v1023
        %v1056 = vsel %vm992, %v951, %v1024
        %v1057 = vsel %vm993, %v954, %v1025
        %v1058 = vsel %vm994, %v957, %v1026
        %v1059 = vsel %vm995, %v960, %v1027
        %v1060 = vsel %vm996, %v963, %v1028
        %v1061 = vld [vmem:[%s4] sm:$0xff]
        %v1062 = vld [vmem:[%s4 + $0x8] sm:$0xff]
        %v1063 = vld [vmem:[%s4 + $0x10] sm:$0xff]
        %v1064 = vld [vmem:[%s4 + $0x18] sm:$0xff]
        %v1065 = vld [vmem:[%s4 + $0x20] sm:$0xff]
        %v1066 = vld [vmem:[%s4 + $0x28] sm:$0xff]
        %v1067 = vld [vmem:[%s4 + $0x30] sm:$0xff]
        %v1068 = vld [vmem:[%s4 + $0x38] sm:$0xff]
        %v1069 = vld [vmem:[%s4 + $0x40] sm:$0xff]
        %v1070 = vld [vmem:[%s4 + $0x48] sm:$0xff]
        %v1071 = vld [vmem:[%s4 + $0x50] sm:$0xff]
        %v1072 = vld [vmem:[%s4 + $0x58] sm:$0xff]
        %v1073 = vld [vmem:[%s4 + $0x60] sm:$0xff]
        %v1074 = vld [vmem:[%s4 + $0x68] sm:$0xff]
        %v1075 = vld [vmem:[%s4 + $0x70] sm:$0xff]
        %v1076 = vld [vmem:[%s4 + $0x78] sm:$0xff]
        %1077 = vmatpush.msra.mxu0 %v1076
        %1078 = vmatpush.msra.mxu0 %v1075
        %1079 = vmatpush.msra.mxu0 %v1074
        %1080 = vmatpush.msra.mxu0 %v1073
        %1081 = vmatpush.msra.mxu0 %v1072
        %1082 = vmatpush.msra.mxu0 %v1071
        %1083 = vmatpush.msra.mxu0 %v1070
        %1084 = vmatpush.msra.mxu0 %v1069
        %1085 = vmatpush.msra.mxu0 %v1068
        %1086 = vmatpush.msra.mxu0 %v1067
        %1087 = vmatpush.msra.mxu0 %v1066
        %1088 = vmatpush.msra.mxu0 %v1065
        %1089 = vmatpush.msra.mxu0 %v1064
        %1090 = vmatpush.msra.mxu0 %v1063
        %1091 = vmatpush.msra.mxu0 %v1062
        %1092 = vmatpush.msra.mxu0 %v1061
        %1093 = vmatmul.f32.gmra.mxu0 %v1029
        %v1094 = vpop.f32.mrf.mxu0
        %v1095 = vadd.f32 %v613, %v1094
        %1096 = vmatmul.f32.gmra.mxu0 %v1030
        %v1097 = vpop.f32.mrf.mxu0
        %v1098 = vadd.f32 %v616, %v1097
        %1099 = vmatmul.f32.gmra.mxu0 %v1031
        %v1100 = vpop.f32.mrf.mxu0
        %v1101 = vadd.f32 %v619, %v1100
        %1102 = vmatmul.f32.gmra.mxu0 %v1032
        %v1103 = vpop.f32.mrf.mxu0
        %v1104 = vadd.f32 %v622, %v1103
        %1105 = vmatmul.f32.gmra.mxu0 %v1033
        %v1106 = vpop.f32.mrf.mxu0
        %v1107 = vadd.f32 %v625, %v1106
        %1108 = vmatmul.f32.gmra.mxu0 %v1034
        %v1109 = vpop.f32.mrf.mxu0
        %v1110 = vadd.f32 %v628, %v1109
        %1111 = vmatmul.f32.gmra.mxu0 %v1035
        %v1112 = vpop.f32.mrf.mxu0
        %v1113 = vadd.f32 %v631, %v1112
        %1114 = vmatmul.f32.gmra.mxu0 %v1036
        %v1115 = vpop.f32.mrf.mxu0
        %v1116 = vadd.f32 %v634, %v1115
        %1117 = vmatmul.f32.gmra.mxu0 %v1037
        %v1118 = vpop.f32.mrf.mxu0
        %v1119 = vadd.f32 %v637, %v1118
        %1120 = vmatmul.f32.gmra.mxu0 %v1038
        %v1121 = vpop.f32.mrf.mxu0
        %v1122 = vadd.f32 %v640, %v1121
        %1123 = vmatmul.f32.gmra.mxu0 %v1039
        %v1124 = vpop.f32.mrf.mxu0
        %v1125 = vadd.f32 %v643, %v1124
        %1126 = vmatmul.f32.gmra.mxu0 %v1040
        %v1127 = vpop.f32.mrf.mxu0
        %v1128 = vadd.f32 %v646, %v1127
        %1129 = vmatmul.f32.gmra.mxu0 %v1041
        %v1130 = vpop.f32.mrf.mxu0
        %v1131 = vadd.f32 %v649, %v1130
        %1132 = vmatmul.f32.gmra.mxu0 %v1042
        %v1133 = vpop.f32.mrf.mxu0
        %v1134 = vadd.f32 %v652, %v1133
        %1135 = vmatmul.f32.gmra.mxu0 %v1043
        %v1136 = vpop.f32.mrf.mxu0
        %v1137 = vadd.f32 %v655, %v1136
        %1138 = vmatmul.f32.gmra.mxu0 %v1044
        %v1139 = vpop.f32.mrf.mxu0
        %v1140 = vadd.f32 %v658, %v1139
        %1141 = vmatmul.f32.gmra.mxu0 %v1045
        %v1142 = vpop.f32.mrf.mxu0
        %v1143 = vadd.f32 %v661, %v1142
        %1144 = vmatmul.f32.gmra.mxu0 %v1046
        %v1145 = vpop.f32.mrf.mxu0
        %v1146 = vadd.f32 %v664, %v1145
        %1147 = vmatmul.f32.gmra.mxu0 %v1047
        %v1148 = vpop.f32.mrf.mxu0
        %v1149 = vadd.f32 %v667, %v1148
        %1150 = vmatmul.f32.gmra.mxu0 %v1048
        %v1151 = vpop.f32.mrf.mxu0
        %v1152 = vadd.f32 %v670, %v1151
        %1153 = vmatmul.f32.gmra.mxu0 %v1049
        %v1154 = vpop.f32.mrf.mxu0
        %v1155 = vadd.f32 %v673, %v1154
        %1156 = vmatmul.f32.gmra.mxu0 %v1050
        %v1157 = vpop.f32.mrf.mxu0
        %v1158 = vadd.f32 %v676, %v1157
        %1159 = vmatmul.f32.gmra.mxu0 %v1051
        %v1160 = vpop.f32.mrf.mxu0
        %v1161 = vadd.f32 %v679, %v1160
        %1162 = vmatmul.f32.gmra.mxu0 %v1052
        %v1163 = vpop.f32.mrf.mxu0
        %v1164 = vadd.f32 %v682, %v1163
        %1165 = vmatmul.f32.gmra.mxu0 %v1053
        %v1166 = vpop.f32.mrf.mxu0
        %v1167 = vadd.f32 %v685, %v1166
        %1168 = vmatmul.f32.gmra.mxu0 %v1054
        %v1169 = vpop.f32.mrf.mxu0
        %v1170 = vadd.f32 %v688, %v1169
        %1171 = vmatmul.f32.gmra.mxu0 %v1055
        %v1172 = vpop.f32.mrf.mxu0
        %v1173 = vadd.f32 %v691, %v1172
        %1174 = vmatmul.f32.gmra.mxu0 %v1056
        %v1175 = vpop.f32.mrf.mxu0
        %v1176 = vadd.f32 %v694, %v1175
        %1177 = vmatmul.f32.gmra.mxu0 %v1057
        %v1178 = vpop.f32.mrf.mxu0
        %v1179 = vadd.f32 %v697, %v1178
        %1180 = vmatmul.f32.gmra.mxu0 %v1058
        %v1181 = vpop.f32.mrf.mxu0
        %v1182 = vadd.f32 %v700, %v1181
        %1183 = vmatmul.f32.gmra.mxu0 %v1059
        %v1184 = vpop.f32.mrf.mxu0
        %v1185 = vadd.f32 %v703, %v1184
        %1186 = vmatmul.f32.gmra.mxu0 %v1060
        %v1187 = vpop.f32.mrf.mxu0
        %v1188 = vadd.f32 %v706, %v1187
        %1189 = vdwg.mxu0
        %1190 = vst [vmem:[%s218] sm:$0xff] %v1095
        %1191 = vst [vmem:[%s218 + $0x8] sm:$0xff] %v1098
        %1192 = vst [vmem:[%s218 + $0x10] sm:$0xff] %v1101
        %1193 = vst [vmem:[%s218 + $0x18] sm:$0xff] %v1104
        %1194 = vst [vmem:[%s218 + $0x20] sm:$0xff] %v1107
        %1195 = vst [vmem:[%s218 + $0x28] sm:$0xff] %v1110
        %1196 = vst [vmem:[%s218 + $0x30] sm:$0xff] %v1113
        %1197 = vst [vmem:[%s218 + $0x38] sm:$0xff] %v1116
        %1198 = vst [vmem:[%s218 + $0x40] sm:$0xff] %v1119
        %1199 = vst [vmem:[%s218 + $0x48] sm:$0xff] %v1122
        %1200 = vst [vmem:[%s218 + $0x50] sm:$0xff] %v1125
        %1201 = vst [vmem:[%s218 + $0x58] sm:$0xff] %v1128
        %1202 = vst [vmem:[%s218 + $0x60] sm:$0xff] %v1131
        %1203 = vst [vmem:[%s218 + $0x68] sm:$0xff] %v1134
        %1204 = vst [vmem:[%s218 + $0x70] sm:$0xff] %v1137
        %1205 = vst [vmem:[%s218 + $0x78] sm:$0xff] %v1140
        %1206 = vst [vmem:[%s218 + $0x80] sm:$0xff] %v1143
        %1207 = vst [vmem:[%s218 + $0x88] sm:$0xff] %v1146
        %1208 = vst [vmem:[%s218 + $0x90] sm:$0xff] %v1149
        %1209 = vst [vmem:[%s218 + $0x98] sm:$0xff] %v1152
        %1210 = vst [vmem:[%s218 + $0xa0] sm:$0xff] %v1155
        %1211 = vst [vmem:[%s218 + $0xa8] sm:$0xff] %v1158
        %1212 = vst [vmem:[%s218 + $0xb0] sm:$0xff] %v1161
        %1213 = vst [vmem:[%s218 + $0xb8] sm:$0xff] %v1164
        %1214 = vst [vmem:[%s218 + $0xc0] sm:$0xff] %v1167
        %1215 = vst [vmem:[%s218 + $0xc8] sm:$0xff] %v1170
        %1216 = vst [vmem:[%s218 + $0xd0] sm:$0xff] %v1173
        %1217 = vst [vmem:[%s218 + $0xd8] sm:$0xff] %v1176
        %1218 = vst [vmem:[%s218 + $0xe0] sm:$0xff] %v1179
        %1219 = vst [vmem:[%s218 + $0xe8] sm:$0xff] %v1182
        %1220 = vst [vmem:[%s218 + $0xf0] sm:$0xff] %v1185
        %1221 = vst [vmem:[%s218 + $0xf8] sm:$0xff] %v1188
        %s1222 = sand.u32 %s137, 1
        %s1223 = scalar_lea.sflag [#allocation3], %s1222
        %s1224 = sand.u32 %s137, 1
        %s1225 = smul.addr %s1224, 256
        %s1226 = scalar_lea.vmem [#allocation2], %s1225
        // Predicated region
        $region41: #{tpu_custom_call.1} parent=39 // pred_check
          %p1227 = pneg %p147
        $region42: #{tpu_custom_call.1} parent=39 // pred_check_branch
          %1229 = sbr.rel (%p1227) target = $region44
        $region43: #{tpu_custom_call.1} parent=39 // pred_region
          %s1230 = smul.u32 32, %s19
          %1232 = vsyncadd %s1223, 0
          %s1233 = smul.addr %s1230, 8
          %s1234 = scalar_lea.hbm %s5, %s1233
          %s1235 = sshll.u32 %s1226, 4
          %s1236 = int_to_ptr.vmem [resolvable:$true] %s1235
          %s1237 = sshll.u32 %s1234, 4
          %s1238 = int_to_ptr.hbm [resolvable:$true] %s1237
          %1243 = dma.vmem_to_hbm [thread:$0]  %s1236, 4096, %s1238, %s1223, 128, 128, 8
        $region44: #{tpu_custom_call.1} parent=39 // pred_fallthru
          _
      $region40: #{tpu_custom_call.1} parent=5 // pred_fallthru
        _
      %p1244 = scmp.le.s32.totalorder 2, %s14
      // Predicated region
      $region45: #{tpu_custom_call.1} parent=5 // pred_check
        %p1245 = pneg %p1244
      $region46: #{tpu_custom_call.1} parent=5 // pred_check_branch
        %1247 = sbr.rel (%p1245) target = $region48
      $region47: #{tpu_custom_call.1} parent=5 // pred_region
        %s1248 = ssub.s32 %s14, 2
        // Predicated region
        $region49: #{tpu_custom_call.1} parent=47 // pred_check
          %p1249 = pneg %p153
        $region50: #{tpu_custom_call.1} parent=47 // pred_check_branch
          %1251 = sbr.rel (%p1249) target = $region52
        $region51: #{tpu_custom_call.1} parent=47 // pred_region
          %s1252 = sand.u32 %s138, 1
          %s1253 = scalar_lea.sflag [#allocation3], %s1252
          %s1254 = sand.u32 %s138, 1
          %s1255 = smul.addr %s1254, 256
          %s1256 = scalar_lea.vmem [#allocation2], %s1255
          %1258 = dma.done %s1253, 4096
        $region52: #{tpu_custom_call.1} parent=47 // pred_fallthru
          _
      $region48: #{tpu_custom_call.1} parent=5 // pred_fallthru
        _
    $region6: #{tpu_custom_call.1} parent=1 // loop_footer
      %s18 = sadd.s32 1, %s14
    $region7: #{tpu_custom_call.1} parent=1 // loop_footer_branch
      %13 = sbr.rel target = $region3
    $region8: #{tpu_custom_call.1} parent=1 // loop_exit
      _
    %1259 = vsyncpa [#allocation3], 1
    %s1260 = scalar_lea.sflag [#allocation3], 1
    %1261 = vsyncpa %s1260, 1

</llo_original>
